<compile_context>
chip_gen: v7x
topology: tpu7x:2x2x1
jax: 0.10.0
libtpu: 0.0.40
codegen_flags: <defaults>
</compile_context>

<pallas_src>
import functools

import jax
import jax.numpy as jnp
from jax.experimental import pallas as pl
from jax.experimental.pallas import tpu as pltpu

EPS = 1e-5


def bn_relu_kernel(x_ref, params_ref, o_ref, *, c_block):
    # x_ref:      (c_block, M) f32 — channels on sublanes, M = N*H*W on lanes.
    # params_ref: (C, 2) f32, resident across all grid steps
    #             (column 0 = gamma, column 1 = beta).
    i = pl.program_id(0)
    c0 = pl.multiple_of(i * c_block, c_block)

    x = x_ref[...]
    inv_m = jnp.float32(1.0 / x.shape[1])

    # Two-pass per-channel batch statistics (biased variance, BN fwd).
    mean = jnp.sum(x, axis=1, keepdims=True) * inv_m         # (c_block, 1)
    xc = x - mean
    var = jnp.sum(xc * xc, axis=1, keepdims=True) * inv_m    # (c_block, 1)
    inv_std = jax.lax.rsqrt(var + EPS)                       # (c_block, 1)

    # Slice this block's channels out of the resident params tile.
    p = params_ref[pl.ds(c0, c_block), :]                    # (c_block, 2)
    gamma = p[:, 0:1]
    beta = p[:, 1:2]

    # Fold affine into per-channel scale/shift -> single fused pass + ReLU.
    scale = gamma * inv_std
    shift = beta - mean * scale
    o_ref[...] = jnp.maximum(x * scale + shift, 0.0)


def _pick_c_block(C):
    # v7x: 2 TensorCores -> 2 parallel channel blocks (one per core).
    # v5e/v6e: single TC -> one grid step avoids paying the ~0.35us per-step
    # fixed overhead more than once on a launch-bound kernel.
    try:
        kind = jax.devices()[0].device_kind.lower()
        if "v7" in kind and C % 2 == 0:
            return C // 2
    except Exception:
        pass
    return C


def batchnorm_relu(x_nchw, gamma, beta, *, c_block=None):
    """x_nchw: (N, C, H, W) float32. BatchNorm2d (training-mode batch stats) + ReLU."""
    N, C, H, W = x_nchw.shape
    M = N * H * W

    if N == 1:
        # Free reshape: (1, C, H, W) -> (C, H*W). No transpose.
        x2d = x_nchw.reshape(C, M)
    else:
        # TODO(synk): N > 1 needs a channels-major transpose plus an M-tiled
        # reduction to respect VMEM; the module under test always sees N == 1.
        x2d = jnp.transpose(x_nchw, (1, 0, 2, 3)).reshape(C, M)

    # Pack affine params into one (C, 2) array -> a single resident DMA.
    params = jnp.concatenate(
        [gamma.reshape(C, 1), beta.reshape(C, 1)], axis=1
    ).astype(jnp.float32)

    if c_block is None:
        c_block = _pick_c_block(C)
    if C % c_block != 0:
        c_block = C
    grid = (C // c_block,)

    kernel = functools.partial(bn_relu_kernel, c_block=c_block)

    out2d = pl.pallas_call(
        kernel,
        out_shape=jax.ShapeDtypeStruct((C, M), jnp.float32),
        grid_spec=pltpu.PrefetchScalarGridSpec(
            num_scalar_prefetch=0,
            grid=grid,
            in_specs=[
                pl.BlockSpec((c_block, M), lambda i: (i, 0)),
                # Constant block index -> params stay resident; Pallas skips
                # the re-fetch after step 0 (no per-step DMA waits for them).
                pl.BlockSpec((C, 2), lambda i: (0, 0)),
            ],
            out_specs=pl.BlockSpec((c_block, M), lambda i: (i, 0)),
        ),
        compiler_params=pltpu.CompilerParams(
            dimension_semantics=("parallel",),
        ),
    )(x2d, params)

    if N == 1:
        return out2d.reshape(1, C, H, W)
    return jnp.transpose(out2d.reshape(C, N, H, W), (1, 0, 2, 3))


def reference(x_nchw, gamma, beta):
    mean = jnp.mean(x_nchw, axis=(0, 2, 3), keepdims=True)
    var = jnp.mean((x_nchw - mean) ** 2, axis=(0, 2, 3), keepdims=True)
    y = (x_nchw - mean) / jnp.sqrt(var + EPS)
    y = y * gamma.reshape(1, -1, 1, 1) + beta.reshape(1, -1, 1, 1)
    return jnp.maximum(y, 0.0)


if __name__ == "__main__":
    key = jax.random.PRNGKey(0)
    kx, kg, kb = jax.random.split(key, 3)

    N, C, H, W = 1, 512, 14, 14  # shape implied by BatchNorm2d(512) and x184
    x = jax.random.normal(kx, (N, C, H, W), dtype=jnp.float32)
    # BatchNorm2d affine params: weight init = 1, bias init = 0 (perturbed
    # deterministically so the affine path is exercised).
    gamma = jnp.ones((C,), jnp.float32) + 0.1 * jax.random.normal(kg, (C,), jnp.float32)
    beta = jnp.zeros((C,), jnp.float32) + 0.1 * jax.random.normal(kb, (C,), jnp.float32)

    out = batchnorm_relu(x, gamma, beta)
    out = jax.block_until_ready(out)

    ref = reference(x, gamma, beta)
    assert out.shape == (N, C, H, W)
    assert jnp.allclose(out, ref, atol=1e-4, rtol=1e-4), "mismatch vs reference"

    print("KERNEL_OK")
</pallas_src>

<mosaic_0001>
module attributes {stable_mosaic.version = 11 : i64} {
  func.func @bn_relu_kernel(%arg0: i32, %arg1: memref<512x196xf32, #tpu.memory_space<vmem>>, %arg2: memref<512x2xf32, #tpu.memory_space<vmem>>, %arg3: memref<512x196xf32, #tpu.memory_space<vmem>>) attributes {dimension_semantics = [#tpu.dimension_semantics<parallel>], iteration_bounds = array<i64: 1>, scalar_prefetch = 0 : i64, scratch_operands = 0 : i64, tpu.core_type = #tpu.core_type<tc>, window_params = [{transform_indices = @transform_0, window_bounds = array<i64: 512, 196>}, {pipeline_mode = #tpu.pipeline_mode<synchronous>, transform_indices = @transform_1, window_bounds = array<i64: 512, 2>}, {transform_indices = @transform_2, window_bounds = array<i64: 512, 196>}]} {
    %c512_i32 = arith.constant 512 : i32
    %0 = arith.muli %arg0, %c512_i32 : i32
    %1 = tpu.assume_multiple %0, 512 : i32
    %c0 = arith.constant 0 : index
    %c0_0 = arith.constant 0 : index
    %2 = vector.load %arg1[%c0, %c0_0] : memref<512x196xf32, #tpu.memory_space<vmem>>, vector<512x196xf32>
    %cst = arith.constant dense<0.000000e+00> : vector<512xf32>
    %3 = vector.multi_reduction <add>, %2, %cst [1] : vector<512x196xf32> to vector<512xf32>
    %4 = vector.shape_cast %3 : vector<512xf32> to vector<512x1xf32>
    %cst_1 = arith.constant 0.00510204071 : f32
    %5 = vector.broadcast %cst_1 : f32 to vector<512x1xf32>
    %6 = arith.mulf %4, %5 : vector<512x1xf32>
    %7 = vector.broadcast %6 : vector<512x1xf32> to vector<512x196xf32>
    %8 = arith.subf %2, %7 : vector<512x196xf32>
    %9 = arith.mulf %8, %8 : vector<512x196xf32>
    %cst_2 = arith.constant dense<0.000000e+00> : vector<512xf32>
    %10 = vector.multi_reduction <add>, %9, %cst_2 [1] : vector<512x196xf32> to vector<512xf32>
    %11 = vector.shape_cast %10 : vector<512xf32> to vector<512x1xf32>
    %cst_3 = arith.constant 0.00510204071 : f32
    %12 = vector.broadcast %cst_3 : f32 to vector<512x1xf32>
    %13 = arith.mulf %11, %12 : vector<512x1xf32>
    %cst_4 = arith.constant 9.99999974E-6 : f32
    %14 = vector.broadcast %cst_4 : f32 to vector<512x1xf32>
    %15 = arith.addf %13, %14 : vector<512x1xf32>
    %16 = math.rsqrt %15 : vector<512x1xf32>
    %17 = arith.index_cast %1 : i32 to index
    %c0_5 = arith.constant 0 : index
    %18 = vector.load %arg2[%17, %c0_5] : memref<512x2xf32, #tpu.memory_space<vmem>>, vector<512x2xf32>
    %19 = vector.extract_strided_slice %18 {offsets = [0, 0], sizes = [512, 1], strides = [1, 1]} : vector<512x2xf32> to vector<512x1xf32>
    %20 = vector.extract_strided_slice %18 {offsets = [0, 1], sizes = [512, 1], strides = [1, 1]} : vector<512x2xf32> to vector<512x1xf32>
    %21 = arith.mulf %19, %16 : vector<512x1xf32>
    %22 = arith.mulf %6, %21 : vector<512x1xf32>
    %23 = arith.subf %20, %22 : vector<512x1xf32>
    %24 = vector.broadcast %21 : vector<512x1xf32> to vector<512x196xf32>
    %25 = arith.mulf %2, %24 : vector<512x196xf32>
    %26 = vector.broadcast %23 : vector<512x1xf32> to vector<512x196xf32>
    %27 = arith.addf %25, %26 : vector<512x196xf32>
    %cst_6 = arith.constant 0.000000e+00 : f32
    %28 = vector.broadcast %cst_6 : f32 to vector<512x196xf32>
    %29 = arith.maximumf %27, %28 : vector<512x196xf32>
    %c0_7 = arith.constant 0 : index
    %c0_8 = arith.constant 0 : index
    %30 = vector.load %arg3[%c0_7, %c0_8] : memref<512x196xf32, #tpu.memory_space<vmem>>, vector<512x196xf32>
    tpu.vector_store %arg3[%c0_7, %c0_8], %29 {strides = array<i32>} : memref<512x196xf32, #tpu.memory_space<vmem>>, vector<512x196xf32>,
    return
  }
  func.func @transform_0(%arg0: i32) -> (i32, i32) {
    %c0_i32 = arith.constant 0 : i32
    %c0_i32_0 = arith.constant 0 : i32
    return %arg0, %c0_i32 : i32, i32
  }
  func.func @transform_1(%arg0: i32) -> (i32, i32) {
    %c0_i32 = arith.constant 0 : i32
    %c0_i32_0 = arith.constant 0 : i32
    %c0_i32_1 = arith.constant 0 : i32
    return %c0_i32, %c0_i32_0 : i32, i32
  }
  func.func @transform_2(%arg0: i32) -> (i32, i32) {
    %c0_i32 = arith.constant 0 : i32
    %c0_i32_0 = arith.constant 0 : i32
    return %arg0, %c0_i32 : i32, i32
  }
}

</mosaic_0001>

<llo_original>
// kernel: tpu_custom_call.1
$region0: #{tpu_custom_call.1}
  #allocation0 [shape = 'u32[]', space=smem, size = 0x4, offset = 0x4, fixed_abs, tag = 'smem constant byte address 0x4 - core index']
  #allocation1 [shape = 'u32[144,128]{1,0:T(1,128)}', space=vmem, size = 0x12000, scoped, tag = 'internal scratch']
  %s0 = inlined_call_operand.vmem [shape: f32[512,196], index: 0, kind: input, shape index: {}]
  %s1 = inlined_call_operand.vmem [shape: f32[512,2], index: 1, kind: input, shape index: {}]
  %s2 = inlined_call_operand.vmem [shape: f32[512,196], index: 2, kind: output, shape index: {}]
  %s3 = sld [smem:[#allocation0]]
  $region18: #{tpu_custom_call.1} parent=0
    _
  %s5 = ssub.s32 1, %s3
  %s6 = scalar_select 0, %s5, %s3
  // Predicated region
  $region2: #{tpu_custom_call.1} parent=0 // pred_check
    _
  $region3: #{tpu_custom_call.1} parent=0 // pred_check_branch
    %8 = sbr.rel (0) target = $region5
  $region4: #{tpu_custom_call.1} parent=0 // pred_region
    _
  $region5: #{tpu_custom_call.1} parent=0 // pred_fallthru
    _
  // Predicated region
  $region6: #{tpu_custom_call.1} parent=0 // pred_check
    _
  $region7: #{tpu_custom_call.1} parent=0 // pred_check_branch
    %10 = sbr.rel (0) target = $region9
  $region8: #{tpu_custom_call.1} parent=0 // pred_region
    _
  $region9: #{tpu_custom_call.1} parent=0 // pred_fallthru
    _
  %s11 = smul.u32 0, 512
  %v12 = vld [vmem:[%s0] sm:$0xff]
  %v13 = vld [vmem:[%s0 + $0x8] sm:$0xff]
  %v14 = vld [vmem:[%s0 + $0x10] sm:$0xff]
  %v15 = vld [vmem:[%s0 + $0x18] sm:$0xff]
  %v16 = vld [vmem:[%s0 + $0x20] sm:$0xff]
  %v17 = vld [vmem:[%s0 + $0x28] sm:$0xff]
  %v18 = vld [vmem:[%s0 + $0x30] sm:$0xff]
  %v19 = vld [vmem:[%s0 + $0x38] sm:$0xff]
  %v20 = vld [vmem:[%s0 + $0x40] sm:$0xff]
  %v21 = vld [vmem:[%s0 + $0x48] sm:$0xff]
  %v22 = vld [vmem:[%s0 + $0x50] sm:$0xff]
  %v23 = vld [vmem:[%s0 + $0x58] sm:$0xff]
  %v24 = vld [vmem:[%s0 + $0x60] sm:$0xff]
  %v25 = vld [vmem:[%s0 + $0x68] sm:$0xff]
  %v26 = vld [vmem:[%s0 + $0x70] sm:$0xff]
  %v27 = vld [vmem:[%s0 + $0x78] sm:$0xff]
  %v28 = vld [vmem:[%s0 + $0x80] sm:$0xff]
  %v29 = vld [vmem:[%s0 + $0x88] sm:$0xff]
  %v30 = vld [vmem:[%s0 + $0x90] sm:$0xff]
  %v31 = vld [vmem:[%s0 + $0x98] sm:$0xff]
  %v32 = vld [vmem:[%s0 + $0xa0] sm:$0xff]
  %v33 = vld [vmem:[%s0 + $0xa8] sm:$0xff]
  %v34 = vld [vmem:[%s0 + $0xb0] sm:$0xff]
  %v35 = vld [vmem:[%s0 + $0xb8] sm:$0xff]
  %v36 = vld [vmem:[%s0 + $0xc0] sm:$0xff]
  %v37 = vld [vmem:[%s0 + $0xc8] sm:$0xff]
  %v38 = vld [vmem:[%s0 + $0xd0] sm:$0xff]
  %v39 = vld [vmem:[%s0 + $0xd8] sm:$0xff]
  %v40 = vld [vmem:[%s0 + $0xe0] sm:$0xff]
  %v41 = vld [vmem:[%s0 + $0xe8] sm:$0xff]
  %v42 = vld [vmem:[%s0 + $0xf0] sm:$0xff]
  %v43 = vld [vmem:[%s0 + $0xf8] sm:$0xff]
  %v44 = vld [vmem:[%s0 + $0x100] sm:$0xff]
  %v45 = vld [vmem:[%s0 + $0x108] sm:$0xff]
  %v46 = vld [vmem:[%s0 + $0x110] sm:$0xff]
  %v47 = vld [vmem:[%s0 + $0x118] sm:$0xff]
  %v48 = vld [vmem:[%s0 + $0x120] sm:$0xff]
  %v49 = vld [vmem:[%s0 + $0x128] sm:$0xff]
  %v50 = vld [vmem:[%s0 + $0x130] sm:$0xff]
  %v51 = vld [vmem:[%s0 + $0x138] sm:$0xff]
  %v52 = vld [vmem:[%s0 + $0x140] sm:$0xff]
  %v53 = vld [vmem:[%s0 + $0x148] sm:$0xff]
  %v54 = vld [vmem:[%s0 + $0x150] sm:$0xff]
  %v55 = vld [vmem:[%s0 + $0x158] sm:$0xff]
  %v56 = vld [vmem:[%s0 + $0x160] sm:$0xff]
  %v57 = vld [vmem:[%s0 + $0x168] sm:$0xff]
  %v58 = vld [vmem:[%s0 + $0x170] sm:$0xff]
  %v59 = vld [vmem:[%s0 + $0x178] sm:$0xff]
  %v60 = vld [vmem:[%s0 + $0x180] sm:$0xff]
  %v61 = vld [vmem:[%s0 + $0x188] sm:$0xff]
  %v62 = vld [vmem:[%s0 + $0x190] sm:$0xff]
  %v63 = vld [vmem:[%s0 + $0x198] sm:$0xff]
  %v64 = vld [vmem:[%s0 + $0x1a0] sm:$0xff]
  %v65 = vld [vmem:[%s0 + $0x1a8] sm:$0xff]
  %v66 = vld [vmem:[%s0 + $0x1b0] sm:$0xff]
  %v67 = vld [vmem:[%s0 + $0x1b8] sm:$0xff]
  %v68 = vld [vmem:[%s0 + $0x1c0] sm:$0xff]
  %v69 = vld [vmem:[%s0 + $0x1c8] sm:$0xff]
  %v70 = vld [vmem:[%s0 + $0x1d0] sm:$0xff]
  %v71 = vld [vmem:[%s0 + $0x1d8] sm:$0xff]
  %v72 = vld [vmem:[%s0 + $0x1e0] sm:$0xff]
  %v73 = vld [vmem:[%s0 + $0x1e8] sm:$0xff]
  %v74 = vld [vmem:[%s0 + $0x1f0] sm:$0xff]
  %v75 = vld [vmem:[%s0 + $0x1f8] sm:$0xff]
  %v76 = vld [vmem:[%s0 + $0x200] sm:$0xff]
  %v77 = vld [vmem:[%s0 + $0x208] sm:$0xff]
  %v78 = vld [vmem:[%s0 + $0x210] sm:$0xff]
  %v79 = vld [vmem:[%s0 + $0x218] sm:$0xff]
  %v80 = vld [vmem:[%s0 + $0x220] sm:$0xff]
  %v81 = vld [vmem:[%s0 + $0x228] sm:$0xff]
  %v82 = vld [vmem:[%s0 + $0x230] sm:$0xff]
  %v83 = vld [vmem:[%s0 + $0x238] sm:$0xff]
  %v84 = vld [vmem:[%s0 + $0x240] sm:$0xff]
  %v85 = vld [vmem:[%s0 + $0x248] sm:$0xff]
  %v86 = vld [vmem:[%s0 + $0x250] sm:$0xff]
  %v87 = vld [vmem:[%s0 + $0x258] sm:$0xff]
  %v88 = vld [vmem:[%s0 + $0x260] sm:$0xff]
  %v89 = vld [vmem:[%s0 + $0x268] sm:$0xff]
  %v90 = vld [vmem:[%s0 + $0x270] sm:$0xff]
  %v91 = vld [vmem:[%s0 + $0x278] sm:$0xff]
  %v92 = vld [vmem:[%s0 + $0x280] sm:$0xff]
  %v93 = vld [vmem:[%s0 + $0x288] sm:$0xff]
  %v94 = vld [vmem:[%s0 + $0x290] sm:$0xff]
  %v95 = vld [vmem:[%s0 + $0x298] sm:$0xff]
  %v96 = vld [vmem:[%s0 + $0x2a0] sm:$0xff]
  %v97 = vld [vmem:[%s0 + $0x2a8] sm:$0xff]
  %v98 = vld [vmem:[%s0 + $0x2b0] sm:$0xff]
  %v99 = vld [vmem:[%s0 + $0x2b8] sm:$0xff]
  %v100 = vld [vmem:[%s0 + $0x2c0] sm:$0xff]
  %v101 = vld [vmem:[%s0 + $0x2c8] sm:$0xff]
  %v102 = vld [vmem:[%s0 + $0x2d0] sm:$0xff]
  %v103 = vld [vmem:[%s0 + $0x2d8] sm:$0xff]
  %v104 = vld [vmem:[%s0 + $0x2e0] sm:$0xff]
  %v105 = vld [vmem:[%s0 + $0x2e8] sm:$0xff]
  %v106 = vld [vmem:[%s0 + $0x2f0] sm:$0xff]
  %v107 = vld [vmem:[%s0 + $0x2f8] sm:$0xff]
  %v108 = vld [vmem:[%s0 + $0x300] sm:$0xff]
  %v109 = vld [vmem:[%s0 + $0x308] sm:$0xff]
  %v110 = vld [vmem:[%s0 + $0x310] sm:$0xff]
  %v111 = vld [vmem:[%s0 + $0x318] sm:$0xff]
  %v112 = vld [vmem:[%s0 + $0x320] sm:$0xff]
  %v113 = vld [vmem:[%s0 + $0x328] sm:$0xff]
  %v114 = vld [vmem:[%s0 + $0x330] sm:$0xff]
  %v115 = vld [vmem:[%s0 + $0x338] sm:$0xff]
  %v116 = vld [vmem:[%s0 + $0x340] sm:$0xff]
  %v117 = vld [vmem:[%s0 + $0x348] sm:$0xff]
  %v118 = vld [vmem:[%s0 + $0x350] sm:$0xff]
  %v119 = vld [vmem:[%s0 + $0x358] sm:$0xff]
  %v120 = vld [vmem:[%s0 + $0x360] sm:$0xff]
  %v121 = vld [vmem:[%s0 + $0x368] sm:$0xff]
  %v122 = vld [vmem:[%s0 + $0x370] sm:$0xff]
  %v123 = vld [vmem:[%s0 + $0x378] sm:$0xff]
  %v124 = vld [vmem:[%s0 + $0x380] sm:$0xff]
  %v125 = vld [vmem:[%s0 + $0x388] sm:$0xff]
  %v126 = vld [vmem:[%s0 + $0x390] sm:$0xff]
  %v127 = vld [vmem:[%s0 + $0x398] sm:$0xff]
  %v128 = vld [vmem:[%s0 + $0x3a0] sm:$0xff]
  %v129 = vld [vmem:[%s0 + $0x3a8] sm:$0xff]
  %v130 = vld [vmem:[%s0 + $0x3b0] sm:$0xff]
  %v131 = vld [vmem:[%s0 + $0x3b8] sm:$0xff]
  %v132 = vld [vmem:[%s0 + $0x3c0] sm:$0xff]
  %v133 = vld [vmem:[%s0 + $0x3c8] sm:$0xff]
  %v134 = vld [vmem:[%s0 + $0x3d0] sm:$0xff]
  %v135 = vld [vmem:[%s0 + $0x3d8] sm:$0xff]
  %v136 = vld [vmem:[%s0 + $0x3e0] sm:$0xff]
  %v137 = vld [vmem:[%s0 + $0x3e8] sm:$0xff]
  %v138 = vld [vmem:[%s0 + $0x3f0] sm:$0xff]
  %v139 = vld [vmem:[%s0 + $0x3f8] sm:$0xff]
  %vm140 = vcmask 556032
  %v141 = vsel %vm140, %v13, 0.0
  %v142 = vadd.f32 %v12, %v141
  %143 = vadd.xlane.f32.xlu0 %v142
  %v144 = vpop.xlane.xlu0 %143
  %v145 = vsel %vm140, %v15, 0.0
  %v146 = vadd.f32 %v14, %v145
  %147 = vadd.xlane.f32.xlu0 %v146
  %v148 = vpop.xlane.xlu0 %147
  %v149 = vsel %vm140, %v17, 0.0
  %v150 = vadd.f32 %v16, %v149
  %151 = vadd.xlane.f32.xlu0 %v150
  %v152 = vpop.xlane.xlu0 %151
  %v153 = vsel %vm140, %v19, 0.0
  %v154 = vadd.f32 %v18, %v153
  %155 = vadd.xlane.f32.xlu0 %v154
  %v156 = vpop.xlane.xlu0 %155
  %v157 = vsel %vm140, %v21, 0.0
  %v158 = vadd.f32 %v20, %v157
  %159 = vadd.xlane.f32.xlu0 %v158
  %v160 = vpop.xlane.xlu0 %159
  %v161 = vsel %vm140, %v23, 0.0
  %v162 = vadd.f32 %v22, %v161
  %163 = vadd.xlane.f32.xlu0 %v162
  %v164 = vpop.xlane.xlu0 %163
  %v165 = vsel %vm140, %v25, 0.0
  %v166 = vadd.f32 %v24, %v165
  %167 = vadd.xlane.f32.xlu0 %v166
  %v168 = vpop.xlane.xlu0 %167
  %v169 = vsel %vm140, %v27, 0.0
  %v170 = vadd.f32 %v26, %v169
  %171 = vadd.xlane.f32.xlu0 %v170
  %v172 = vpop.xlane.xlu0 %171
  %v173 = vsel %vm140, %v29, 0.0
  %v174 = vadd.f32 %v28, %v173
  %175 = vadd.xlane.f32.xlu0 %v174
  %v176 = vpop.xlane.xlu0 %175
  %v177 = vsel %vm140, %v31, 0.0
  %v178 = vadd.f32 %v30, %v177
  %179 = vadd.xlane.f32.xlu0 %v178
  %v180 = vpop.xlane.xlu0 %179
  %v181 = vsel %vm140, %v33, 0.0
  %v182 = vadd.f32 %v32, %v181
  %183 = vadd.xlane.f32.xlu0 %v182
  %v184 = vpop.xlane.xlu0 %183
  %v185 = vsel %vm140, %v35, 0.0
  %v186 = vadd.f32 %v34, %v185
  %187 = vadd.xlane.f32.xlu0 %v186
  %v188 = vpop.xlane.xlu0 %187
  %v189 = vsel %vm140, %v37, 0.0
  %v190 = vadd.f32 %v36, %v189
  %191 = vadd.xlane.f32.xlu0 %v190
  %v192 = vpop.xlane.xlu0 %191
  %v193 = vsel %vm140, %v39, 0.0
  %v194 = vadd.f32 %v38, %v193
  %195 = vadd.xlane.f32.xlu0 %v194
  %v196 = vpop.xlane.xlu0 %195
  %v197 = vsel %vm140, %v41, 0.0
  %v198 = vadd.f32 %v40, %v197
  %199 = vadd.xlane.f32.xlu0 %v198
  %v200 = vpop.xlane.xlu0 %199
  %v201 = vsel %vm140, %v43, 0.0
  %v202 = vadd.f32 %v42, %v201
  %203 = vadd.xlane.f32.xlu0 %v202
  %v204 = vpop.xlane.xlu0 %203
  %v205 = vsel %vm140, %v45, 0.0
  %v206 = vadd.f32 %v44, %v205
  %207 = vadd.xlane.f32.xlu0 %v206
  %v208 = vpop.xlane.xlu0 %207
  %v209 = vsel %vm140, %v47, 0.0
  %v210 = vadd.f32 %v46, %v209
  %211 = vadd.xlane.f32.xlu0 %v210
  %v212 = vpop.xlane.xlu0 %211
  %v213 = vsel %vm140, %v49, 0.0
  %v214 = vadd.f32 %v48, %v213
  %215 = vadd.xlane.f32.xlu0 %v214
  %v216 = vpop.xlane.xlu0 %215
  %v217 = vsel %vm140, %v51, 0.0
  %v218 = vadd.f32 %v50, %v217
  %219 = vadd.xlane.f32.xlu0 %v218
  %v220 = vpop.xlane.xlu0 %219
  %v221 = vsel %vm140, %v53, 0.0
  %v222 = vadd.f32 %v52, %v221
  %223 = vadd.xlane.f32.xlu0 %v222
  %v224 = vpop.xlane.xlu0 %223
  %v225 = vsel %vm140, %v55, 0.0
  %v226 = vadd.f32 %v54, %v225
  %227 = vadd.xlane.f32.xlu0 %v226
  %v228 = vpop.xlane.xlu0 %227
  %v229 = vsel %vm140, %v57, 0.0
  %v230 = vadd.f32 %v56, %v229
  %231 = vadd.xlane.f32.xlu0 %v230
  %v232 = vpop.xlane.xlu0 %231
  %v233 = vsel %vm140, %v59, 0.0
  %v234 = vadd.f32 %v58, %v233
  %235 = vadd.xlane.f32.xlu0 %v234
  %v236 = vpop.xlane.xlu0 %235
  %v237 = vsel %vm140, %v61, 0.0
  %v238 = vadd.f32 %v60, %v237
  %239 = vadd.xlane.f32.xlu0 %v238
  %v240 = vpop.xlane.xlu0 %239
  %v241 = vsel %vm140, %v63, 0.0
  %v242 = vadd.f32 %v62, %v241
  %243 = vadd.xlane.f32.xlu0 %v242
  %v244 = vpop.xlane.xlu0 %243
  %v245 = vsel %vm140, %v65, 0.0
  %v246 = vadd.f32 %v64, %v245
  %247 = vadd.xlane.f32.xlu0 %v246
  %v248 = vpop.xlane.xlu0 %247
  %v249 = vsel %vm140, %v67, 0.0
  %v250 = vadd.f32 %v66, %v249
  %251 = vadd.xlane.f32.xlu0 %v250
  %v252 = vpop.xlane.xlu0 %251
  %v253 = vsel %vm140, %v69, 0.0
  %v254 = vadd.f32 %v68, %v253
  %255 = vadd.xlane.f32.xlu0 %v254
  %v256 = vpop.xlane.xlu0 %255
  %v257 = vsel %vm140, %v71, 0.0
  %v258 = vadd.f32 %v70, %v257
  %259 = vadd.xlane.f32.xlu0 %v258
  %v260 = vpop.xlane.xlu0 %259
  %v261 = vsel %vm140, %v73, 0.0
  %v262 = vadd.f32 %v72, %v261
  %263 = vadd.xlane.f32.xlu0 %v262
  %v264 = vpop.xlane.xlu0 %263
  %v265 = vsel %vm140, %v75, 0.0
  %v266 = vadd.f32 %v74, %v265
  %267 = vadd.xlane.f32.xlu0 %v266
  %v268 = vpop.xlane.xlu0 %267
  %v269 = vsel %vm140, %v77, 0.0
  %v270 = vadd.f32 %v76, %v269
  %271 = vadd.xlane.f32.xlu0 %v270
  %v272 = vpop.xlane.xlu0 %271
  %v273 = vsel %vm140, %v79, 0.0
  %v274 = vadd.f32 %v78, %v273
  %275 = vadd.xlane.f32.xlu0 %v274
  %v276 = vpop.xlane.xlu0 %275
  %v277 = vsel %vm140, %v81, 0.0
  %v278 = vadd.f32 %v80, %v277
  %279 = vadd.xlane.f32.xlu0 %v278
  %v280 = vpop.xlane.xlu0 %279
  %v281 = vsel %vm140, %v83, 0.0
  %v282 = vadd.f32 %v82, %v281
  %283 = vadd.xlane.f32.xlu0 %v282
  %v284 = vpop.xlane.xlu0 %283
  %v285 = vsel %vm140, %v85, 0.0
  %v286 = vadd.f32 %v84, %v285
  %287 = vadd.xlane.f32.xlu0 %v286
  %v288 = vpop.xlane.xlu0 %287
  %v289 = vsel %vm140, %v87, 0.0
  %v290 = vadd.f32 %v86, %v289
  %291 = vadd.xlane.f32.xlu0 %v290
  %v292 = vpop.xlane.xlu0 %291
  %v293 = vsel %vm140, %v89, 0.0
  %v294 = vadd.f32 %v88, %v293
  %295 = vadd.xlane.f32.xlu0 %v294
  %v296 = vpop.xlane.xlu0 %295
  %v297 = vsel %vm140, %v91, 0.0
  %v298 = vadd.f32 %v90, %v297
  %299 = vadd.xlane.f32.xlu0 %v298
  %v300 = vpop.xlane.xlu0 %299
  %v301 = vsel %vm140, %v93, 0.0
  %v302 = vadd.f32 %v92, %v301
  %303 = vadd.xlane.f32.xlu0 %v302
  %v304 = vpop.xlane.xlu0 %303
  %v305 = vsel %vm140, %v95, 0.0
  %v306 = vadd.f32 %v94, %v305
  %307 = vadd.xlane.f32.xlu0 %v306
  %v308 = vpop.xlane.xlu0 %307
  %v309 = vsel %vm140, %v97, 0.0
  %v310 = vadd.f32 %v96, %v309
  %311 = vadd.xlane.f32.xlu0 %v310
  %v312 = vpop.xlane.xlu0 %311
  %v313 = vsel %vm140, %v99, 0.0
  %v314 = vadd.f32 %v98, %v313
  %315 = vadd.xlane.f32.xlu0 %v314
  %v316 = vpop.xlane.xlu0 %315
  %v317 = vsel %vm140, %v101, 0.0
  %v318 = vadd.f32 %v100, %v317
  %319 = vadd.xlane.f32.xlu0 %v318
  %v320 = vpop.xlane.xlu0 %319
  %v321 = vsel %vm140, %v103, 0.0
  %v322 = vadd.f32 %v102, %v321
  %323 = vadd.xlane.f32.xlu0 %v322
  %v324 = vpop.xlane.xlu0 %323
  %v325 = vsel %vm140, %v105, 0.0
  %v326 = vadd.f32 %v104, %v325
  %327 = vadd.xlane.f32.xlu0 %v326
  %v328 = vpop.xlane.xlu0 %327
  %v329 = vsel %vm140, %v107, 0.0
  %v330 = vadd.f32 %v106, %v329
  %331 = vadd.xlane.f32.xlu0 %v330
  %v332 = vpop.xlane.xlu0 %331
  %v333 = vsel %vm140, %v109, 0.0
  %v334 = vadd.f32 %v108, %v333
  %335 = vadd.xlane.f32.xlu0 %v334
  %v336 = vpop.xlane.xlu0 %335
  %v337 = vsel %vm140, %v111, 0.0
  %v338 = vadd.f32 %v110, %v337
  %339 = vadd.xlane.f32.xlu0 %v338
  %v340 = vpop.xlane.xlu0 %339
  %v341 = vsel %vm140, %v113, 0.0
  %v342 = vadd.f32 %v112, %v341
  %343 = vadd.xlane.f32.xlu0 %v342
  %v344 = vpop.xlane.xlu0 %343
  %v345 = vsel %vm140, %v115, 0.0
  %v346 = vadd.f32 %v114, %v345
  %347 = vadd.xlane.f32.xlu0 %v346
  %v348 = vpop.xlane.xlu0 %347
  %v349 = vsel %vm140, %v117, 0.0
  %v350 = vadd.f32 %v116, %v349
  %351 = vadd.xlane.f32.xlu0 %v350
  %v352 = vpop.xlane.xlu0 %351
  %v353 = vsel %vm140, %v119, 0.0
  %v354 = vadd.f32 %v118, %v353
  %355 = vadd.xlane.f32.xlu0 %v354
  %v356 = vpop.xlane.xlu0 %355
  %v357 = vsel %vm140, %v121, 0.0
  %v358 = vadd.f32 %v120, %v357
  %359 = vadd.xlane.f32.xlu0 %v358
  %v360 = vpop.xlane.xlu0 %359
  %v361 = vsel %vm140, %v123, 0.0
  %v362 = vadd.f32 %v122, %v361
  %363 = vadd.xlane.f32.xlu0 %v362
  %v364 = vpop.xlane.xlu0 %363
  %v365 = vsel %vm140, %v125, 0.0
  %v366 = vadd.f32 %v124, %v365
  %367 = vadd.xlane.f32.xlu0 %v366
  %v368 = vpop.xlane.xlu0 %367
  %v369 = vsel %vm140, %v127, 0.0
  %v370 = vadd.f32 %v126, %v369
  %371 = vadd.xlane.f32.xlu0 %v370
  %v372 = vpop.xlane.xlu0 %371
  %v373 = vsel %vm140, %v129, 0.0
  %v374 = vadd.f32 %v128, %v373
  %375 = vadd.xlane.f32.xlu0 %v374
  %v376 = vpop.xlane.xlu0 %375
  %v377 = vsel %vm140, %v131, 0.0
  %v378 = vadd.f32 %v130, %v377
  %379 = vadd.xlane.f32.xlu0 %v378
  %v380 = vpop.xlane.xlu0 %379
  %v381 = vsel %vm140, %v133, 0.0
  %v382 = vadd.f32 %v132, %v381
  %383 = vadd.xlane.f32.xlu0 %v382
  %v384 = vpop.xlane.xlu0 %383
  %v385 = vsel %vm140, %v135, 0.0
  %v386 = vadd.f32 %v134, %v385
  %387 = vadd.xlane.f32.xlu0 %v386
  %v388 = vpop.xlane.xlu0 %387
  %v389 = vsel %vm140, %v137, 0.0
  %v390 = vadd.f32 %v136, %v389
  %391 = vadd.xlane.f32.xlu0 %v390
  %v392 = vpop.xlane.xlu0 %391
  %v393 = vsel %vm140, %v139, 0.0
  %v394 = vadd.f32 %v138, %v393
  %395 = vadd.xlane.f32.xlu0 %v394
  %v396 = vpop.xlane.xlu0 %395
  %v397 = vmul.f32 %v144, 0.0051020407
  %v398 = vmul.f32 %v148, 0.0051020407
  %v399 = vmul.f32 %v152, 0.0051020407
  %v400 = vmul.f32 %v156, 0.0051020407
  %v401 = vmul.f32 %v160, 0.0051020407
  %v402 = vmul.f32 %v164, 0.0051020407
  %v403 = vmul.f32 %v168, 0.0051020407
  %v404 = vmul.f32 %v172, 0.0051020407
  %v405 = vmul.f32 %v176, 0.0051020407
  %v406 = vmul.f32 %v180, 0.0051020407
  %v407 = vmul.f32 %v184, 0.0051020407
  %v408 = vmul.f32 %v188, 0.0051020407
  %v409 = vmul.f32 %v192, 0.0051020407
  %v410 = vmul.f32 %v196, 0.0051020407
  %v411 = vmul.f32 %v200, 0.0051020407
  %v412 = vmul.f32 %v204, 0.0051020407
  %v413 = vmul.f32 %v208, 0.0051020407
  %v414 = vmul.f32 %v212, 0.0051020407
  %v415 = vmul.f32 %v216, 0.0051020407
  %v416 = vmul.f32 %v220, 0.0051020407
  %v417 = vmul.f32 %v224, 0.0051020407
  %v418 = vmul.f32 %v228, 0.0051020407
  %v419 = vmul.f32 %v232, 0.0051020407
  %v420 = vmul.f32 %v236, 0.0051020407
  %v421 = vmul.f32 %v240, 0.0051020407
  %v422 = vmul.f32 %v244, 0.0051020407
  %v423 = vmul.f32 %v248, 0.0051020407
  %v424 = vmul.f32 %v252, 0.0051020407
  %v425 = vmul.f32 %v256, 0.0051020407
  %v426 = vmul.f32 %v260, 0.0051020407
  %v427 = vmul.f32 %v264, 0.0051020407
  %v428 = vmul.f32 %v268, 0.0051020407
  %v429 = vmul.f32 %v272, 0.0051020407
  %v430 = vmul.f32 %v276, 0.0051020407
  %v431 = vmul.f32 %v280, 0.0051020407
  %v432 = vmul.f32 %v284, 0.0051020407
  %v433 = vmul.f32 %v288, 0.0051020407
  %v434 = vmul.f32 %v292, 0.0051020407
  %v435 = vmul.f32 %v296, 0.0051020407
  %v436 = vmul.f32 %v300, 0.0051020407
  %v437 = vmul.f32 %v304, 0.0051020407
  %v438 = vmul.f32 %v308, 0.0051020407
  %v439 = vmul.f32 %v312, 0.0051020407
  %v440 = vmul.f32 %v316, 0.0051020407
  %v441 = vmul.f32 %v320, 0.0051020407
  %v442 = vmul.f32 %v324, 0.0051020407
  %v443 = vmul.f32 %v328, 0.0051020407
  %v444 = vmul.f32 %v332, 0.0051020407
  %v445 = vmul.f32 %v336, 0.0051020407
  %v446 = vmul.f32 %v340, 0.0051020407
  %v447 = vmul.f32 %v344, 0.0051020407
  %v448 = vmul.f32 %v348, 0.0051020407
  %v449 = vmul.f32 %v352, 0.0051020407
  %v450 = vmul.f32 %v356, 0.0051020407
  %v451 = vmul.f32 %v360, 0.0051020407
  %v452 = vmul.f32 %v364, 0.0051020407
  %v453 = vmul.f32 %v368, 0.0051020407
  %v454 = vmul.f32 %v372, 0.0051020407
  %v455 = vmul.f32 %v376, 0.0051020407
  %v456 = vmul.f32 %v380, 0.0051020407
  %v457 = vmul.f32 %v384, 0.0051020407
  %v458 = vmul.f32 %v388, 0.0051020407
  %v459 = vmul.f32 %v392, 0.0051020407
  %v460 = vmul.f32 %v396, 0.0051020407
  %v461 = vsub.f32 %v12, %v397
  %v462 = vsub.f32 %v13, %v397
  %v463 = vsub.f32 %v14, %v398
  %v464 = vsub.f32 %v15, %v398
  %v465 = vsub.f32 %v16, %v399
  %v466 = vsub.f32 %v17, %v399
  %v467 = vsub.f32 %v18, %v400
  %v468 = vsub.f32 %v19, %v400
  %v469 = vsub.f32 %v20, %v401
  %v470 = vsub.f32 %v21, %v401
  %v471 = vsub.f32 %v22, %v402
  %v472 = vsub.f32 %v23, %v402
  %v473 = vsub.f32 %v24, %v403
  %v474 = vsub.f32 %v25, %v403
  %v475 = vsub.f32 %v26, %v404
  %v476 = vsub.f32 %v27, %v404
  %v477 = vsub.f32 %v28, %v405
  %v478 = vsub.f32 %v29, %v405
  %v479 = vsub.f32 %v30, %v406
  %v480 = vsub.f32 %v31, %v406
  %v481 = vsub.f32 %v32, %v407
  %v482 = vsub.f32 %v33, %v407
  %v483 = vsub.f32 %v34, %v408
  %v484 = vsub.f32 %v35, %v408
  %v485 = vsub.f32 %v36, %v409
  %v486 = vsub.f32 %v37, %v409
  %v487 = vsub.f32 %v38, %v410
  %v488 = vsub.f32 %v39, %v410
  %v489 = vsub.f32 %v40, %v411
  %v490 = vsub.f32 %v41, %v411
  %v491 = vsub.f32 %v42, %v412
  %v492 = vsub.f32 %v43, %v412
  %v493 = vsub.f32 %v44, %v413
  %v494 = vsub.f32 %v45, %v413
  %v495 = vsub.f32 %v46, %v414
  %v496 = vsub.f32 %v47, %v414
  %v497 = vsub.f32 %v48, %v415
  %v498 = vsub.f32 %v49, %v415
  %v499 = vsub.f32 %v50, %v416
  %v500 = vsub.f32 %v51, %v416
  %v501 = vsub.f32 %v52, %v417
  %v502 = vsub.f32 %v53, %v417
  %v503 = vsub.f32 %v54, %v418
  %v504 = vsub.f32 %v55, %v418
  %v505 = vsub.f32 %v56, %v419
  %v506 = vsub.f32 %v57, %v419
  %v507 = vsub.f32 %v58, %v420
  %v508 = vsub.f32 %v59, %v420
  %v509 = vsub.f32 %v60, %v421
  %v510 = vsub.f32 %v61, %v421
  %v511 = vsub.f32 %v62, %v422
  %v512 = vsub.f32 %v63, %v422
  %v513 = vsub.f32 %v64, %v423
  %v514 = vsub.f32 %v65, %v423
  %v515 = vsub.f32 %v66, %v424
  %v516 = vsub.f32 %v67, %v424
  %v517 = vsub.f32 %v68, %v425
  %v518 = vsub.f32 %v69, %v425
  %v519 = vsub.f32 %v70, %v426
  %v520 = vsub.f32 %v71, %v426
  %v521 = vsub.f32 %v72, %v427
  %v522 = vsub.f32 %v73, %v427
  %v523 = vsub.f32 %v74, %v428
  %v524 = vsub.f32 %v75, %v428
  %v525 = vsub.f32 %v76, %v429
  %v526 = vsub.f32 %v77, %v429
  %v527 = vsub.f32 %v78, %v430
  %v528 = vsub.f32 %v79, %v430
  %v529 = vsub.f32 %v80, %v431
  %v530 = vsub.f32 %v81, %v431
  %v531 = vsub.f32 %v82, %v432
  %v532 = vsub.f32 %v83, %v432
  %v533 = vsub.f32 %v84, %v433
  %v534 = vsub.f32 %v85, %v433
  %v535 = vsub.f32 %v86, %v434
  %v536 = vsub.f32 %v87, %v434
  %v537 = vsub.f32 %v88, %v435
  %v538 = vsub.f32 %v89, %v435
  %v539 = vsub.f32 %v90, %v436
  %v540 = vsub.f32 %v91, %v436
  %v541 = vsub.f32 %v92, %v437
  %v542 = vsub.f32 %v93, %v437
  %v543 = vsub.f32 %v94, %v438
  %v544 = vsub.f32 %v95, %v438
  %v545 = vsub.f32 %v96, %v439
  %v546 = vsub.f32 %v97, %v439
  %v547 = vsub.f32 %v98, %v440
  %v548 = vsub.f32 %v99, %v440
  %v549 = vsub.f32 %v100, %v441
  %v550 = vsub.f32 %v101, %v441
  %v551 = vsub.f32 %v102, %v442
  %v552 = vsub.f32 %v103, %v442
  %v553 = vsub.f32 %v104, %v443
  %v554 = vsub.f32 %v105, %v443
  %v555 = vsub.f32 %v106, %v444
  %v556 = vsub.f32 %v107, %v444
  %v557 = vsub.f32 %v108, %v445
  %v558 = vsub.f32 %v109, %v445
  %v559 = vsub.f32 %v110, %v446
  %v560 = vsub.f32 %v111, %v446
  %v561 = vsub.f32 %v112, %v447
  %v562 = vsub.f32 %v113, %v447
  %v563 = vsub.f32 %v114, %v448
  %v564 = vsub.f32 %v115, %v448
  %v565 = vsub.f32 %v116, %v449
  %v566 = vsub.f32 %v117, %v449
  %v567 = vsub.f32 %v118, %v450
  %v568 = vsub.f32 %v119, %v450
  %v569 = vsub.f32 %v120, %v451
  %v570 = vsub.f32 %v121, %v451
  %v571 = vsub.f32 %v122, %v452
  %v572 = vsub.f32 %v123, %v452
  %v573 = vsub.f32 %v124, %v453
  %v574 = vsub.f32 %v125, %v453
  %v575 = vsub.f32 %v126, %v454
  %v576 = vsub.f32 %v127, %v454
  %v577 = vsub.f32 %v128, %v455
  %v578 = vsub.f32 %v129, %v455
  %v579 = vsub.f32 %v130, %v456
  %v580 = vsub.f32 %v131, %v456
  %v581 = vsub.f32 %v132, %v457
  %v582 = vsub.f32 %v133, %v457
  %v583 = vsub.f32 %v134, %v458
  %v584 = vsub.f32 %v135, %v458
  %v585 = vsub.f32 %v136, %v459
  %v586 = vsub.f32 %v137, %v459
  %v587 = vsub.f32 %v138, %v460
  %v588 = vsub.f32 %v139, %v460
  %v589 = vmul.f32 %v461, %v461
  %v590 = vmul.f32 %v462, %v462
  %v591 = vmul.f32 %v463, %v463
  %v592 = vmul.f32 %v464, %v464
  %v593 = vmul.f32 %v465, %v465
  %v594 = vmul.f32 %v466, %v466
  %v595 = vmul.f32 %v467, %v467
  %v596 = vmul.f32 %v468, %v468
  %v597 = vmul.f32 %v469, %v469
  %v598 = vmul.f32 %v470, %v470
  %v599 = vmul.f32 %v471, %v471
  %v600 = vmul.f32 %v472, %v472
  %v601 = vmul.f32 %v473, %v473
  %v602 = vmul.f32 %v474, %v474
  %v603 = vmul.f32 %v475, %v475
  %v604 = vmul.f32 %v476, %v476
  %v605 = vmul.f32 %v477, %v477
  %v606 = vmul.f32 %v478, %v478
  %v607 = vmul.f32 %v479, %v479
  %v608 = vmul.f32 %v480, %v480
  %v609 = vmul.f32 %v481, %v481
  %v610 = vmul.f32 %v482, %v482
  %v611 = vmul.f32 %v483, %v483
  %v612 = vmul.f32 %v484, %v484
  %v613 = vmul.f32 %v485, %v485
  %v614 = vmul.f32 %v486, %v486
  %v615 = vmul.f32 %v487, %v487
  %v616 = vmul.f32 %v488, %v488
  %v617 = vmul.f32 %v489, %v489
  %v618 = vmul.f32 %v490, %v490
  %v619 = vmul.f32 %v491, %v491
  %v620 = vmul.f32 %v492, %v492
  %v621 = vmul.f32 %v493, %v493
  %v622 = vmul.f32 %v494, %v494
  %v623 = vmul.f32 %v495, %v495
  %v624 = vmul.f32 %v496, %v496
  %v625 = vmul.f32 %v497, %v497
  %v626 = vmul.f32 %v498, %v498
  %v627 = vmul.f32 %v499, %v499
  %v628 = vmul.f32 %v500, %v500
  %v629 = vmul.f32 %v501, %v501
  %v630 = vmul.f32 %v502, %v502
  %v631 = vmul.f32 %v503, %v503
  %v632 = vmul.f32 %v504, %v504
  %v633 = vmul.f32 %v505, %v505
  %v634 = vmul.f32 %v506, %v506
  %v635 = vmul.f32 %v507, %v507
  %v636 = vmul.f32 %v508, %v508
  %v637 = vmul.f32 %v509, %v509
  %v638 = vmul.f32 %v510, %v510
  %v639 = vmul.f32 %v511, %v511
  %v640 = vmul.f32 %v512, %v512
  %v641 = vmul.f32 %v513, %v513
  %v642 = vmul.f32 %v514, %v514
  %v643 = vmul.f32 %v515, %v515
  %v644 = vmul.f32 %v516, %v516
  %v645 = vmul.f32 %v517, %v517
  %v646 = vmul.f32 %v518, %v518
  %v647 = vmul.f32 %v519, %v519
  %v648 = vmul.f32 %v520, %v520
  %v649 = vmul.f32 %v521, %v521
  %v650 = vmul.f32 %v522, %v522
  %v651 = vmul.f32 %v523, %v523
  %v652 = vmul.f32 %v524, %v524
  %v653 = vmul.f32 %v525, %v525
  %v654 = vmul.f32 %v526, %v526
  %v655 = vmul.f32 %v527, %v527
  %v656 = vmul.f32 %v528, %v528
  %v657 = vmul.f32 %v529, %v529
  %v658 = vmul.f32 %v530, %v530
  %v659 = vmul.f32 %v531, %v531
  %v660 = vmul.f32 %v532, %v532
  %v661 = vmul.f32 %v533, %v533
  %v662 = vmul.f32 %v534, %v534
  %v663 = vmul.f32 %v535, %v535
  %v664 = vmul.f32 %v536, %v536
  %v665 = vmul.f32 %v537, %v537
  %v666 = vmul.f32 %v538, %v538
  %v667 = vmul.f32 %v539, %v539
  %v668 = vmul.f32 %v540, %v540
  %v669 = vmul.f32 %v541, %v541
  %v670 = vmul.f32 %v542, %v542
  %v671 = vmul.f32 %v543, %v543
  %v672 = vmul.f32 %v544, %v544
  %v673 = vmul.f32 %v545, %v545
  %v674 = vmul.f32 %v546, %v546
  %v675 = vmul.f32 %v547, %v547
  %v676 = vmul.f32 %v548, %v548
  %v677 = vmul.f32 %v549, %v549
  %v678 = vmul.f32 %v550, %v550
  %v679 = vmul.f32 %v551, %v551
  %v680 = vmul.f32 %v552, %v552
  %v681 = vmul.f32 %v553, %v553
  %v682 = vmul.f32 %v554, %v554
  %v683 = vmul.f32 %v555, %v555
  %v684 = vmul.f32 %v556, %v556
  %v685 = vmul.f32 %v557, %v557
  %v686 = vmul.f32 %v558, %v558
  %v687 = vmul.f32 %v559, %v559
  %v688 = vmul.f32 %v560, %v560
  %v689 = vmul.f32 %v561, %v561
  %v690 = vmul.f32 %v562, %v562
  %v691 = vmul.f32 %v563, %v563
  %v692 = vmul.f32 %v564, %v564
  %v693 = vmul.f32 %v565, %v565
  %v694 = vmul.f32 %v566, %v566
  %v695 = vmul.f32 %v567, %v567
  %v696 = vmul.f32 %v568, %v568
  %v697 = vmul.f32 %v569, %v569
  %v698 = vmul.f32 %v570, %v570
  %v699 = vmul.f32 %v571, %v571
  %v700 = vmul.f32 %v572, %v572
  %v701 = vmul.f32 %v573, %v573
  %v702 = vmul.f32 %v574, %v574
  %v703 = vmul.f32 %v575, %v575
  %v704 = vmul.f32 %v576, %v576
  %v705 = vmul.f32 %v577, %v577
  %v706 = vmul.f32 %v578, %v578
  %v707 = vmul.f32 %v579, %v579
  %v708 = vmul.f32 %v580, %v580
  %v709 = vmul.f32 %v581, %v581
  %v710 = vmul.f32 %v582, %v582
  %v711 = vmul.f32 %v583, %v583
  %v712 = vmul.f32 %v584, %v584
  %v713 = vmul.f32 %v585, %v585
  %v714 = vmul.f32 %v586, %v586
  %v715 = vmul.f32 %v587, %v587
  %v716 = vmul.f32 %v588, %v588
  %v717 = vsel %vm140, %v590, 0.0
  %v718 = vadd.f32 %v589, %v717
  %719 = vadd.xlane.f32.xlu0 %v718
  %v720 = vpop.xlane.xlu0 %719
  %v721 = vsel %vm140, %v592, 0.0
  %v722 = vadd.f32 %v591, %v721
  %723 = vadd.xlane.f32.xlu0 %v722
  %v724 = vpop.xlane.xlu0 %723
  %v725 = vsel %vm140, %v594, 0.0
  %v726 = vadd.f32 %v593, %v725
  %727 = vadd.xlane.f32.xlu0 %v726
  %v728 = vpop.xlane.xlu0 %727
  %v729 = vsel %vm140, %v596, 0.0
  %v730 = vadd.f32 %v595, %v729
  %731 = vadd.xlane.f32.xlu0 %v730
  %v732 = vpop.xlane.xlu0 %731
  %v733 = vsel %vm140, %v598, 0.0
  %v734 = vadd.f32 %v597, %v733
  %735 = vadd.xlane.f32.xlu0 %v734
  %v736 = vpop.xlane.xlu0 %735
  %v737 = vsel %vm140, %v600, 0.0
  %v738 = vadd.f32 %v599, %v737
  %739 = vadd.xlane.f32.xlu0 %v738
  %v740 = vpop.xlane.xlu0 %739
  %v741 = vsel %vm140, %v602, 0.0
  %v742 = vadd.f32 %v601, %v741
  %743 = vadd.xlane.f32.xlu0 %v742
  %v744 = vpop.xlane.xlu0 %743
  %v745 = vsel %vm140, %v604, 0.0
  %v746 = vadd.f32 %v603, %v745
  %747 = vadd.xlane.f32.xlu0 %v746
  %v748 = vpop.xlane.xlu0 %747
  %v749 = vsel %vm140, %v606, 0.0
  %v750 = vadd.f32 %v605, %v749
  %751 = vadd.xlane.f32.xlu0 %v750
  %v752 = vpop.xlane.xlu0 %751
  %v753 = vsel %vm140, %v608, 0.0
  %v754 = vadd.f32 %v607, %v753
  %755 = vadd.xlane.f32.xlu0 %v754
  %v756 = vpop.xlane.xlu0 %755
  %v757 = vsel %vm140, %v610, 0.0
  %v758 = vadd.f32 %v609, %v757
  %759 = vadd.xlane.f32.xlu0 %v758
  %v760 = vpop.xlane.xlu0 %759
  %v761 = vsel %vm140, %v612, 0.0
  %v762 = vadd.f32 %v611, %v761
  %763 = vadd.xlane.f32.xlu0 %v762
  %v764 = vpop.xlane.xlu0 %763
  %v765 = vsel %vm140, %v614, 0.0
  %v766 = vadd.f32 %v613, %v765
  %767 = vadd.xlane.f32.xlu0 %v766
  %v768 = vpop.xlane.xlu0 %767
  %v769 = vsel %vm140, %v616, 0.0
  %v770 = vadd.f32 %v615, %v769
  %771 = vadd.xlane.f32.xlu0 %v770
  %v772 = vpop.xlane.xlu0 %771
  %v773 = vsel %vm140, %v618, 0.0
  %v774 = vadd.f32 %v617, %v773
  %775 = vadd.xlane.f32.xlu0 %v774
  %v776 = vpop.xlane.xlu0 %775
  %v777 = vsel %vm140, %v620, 0.0
  %v778 = vadd.f32 %v619, %v777
  %779 = vadd.xlane.f32.xlu0 %v778
  %v780 = vpop.xlane.xlu0 %779
  %v781 = vsel %vm140, %v622, 0.0
  %v782 = vadd.f32 %v621, %v781
  %783 = vadd.xlane.f32.xlu0 %v782
  %v784 = vpop.xlane.xlu0 %783
  %v785 = vsel %vm140, %v624, 0.0
  %v786 = vadd.f32 %v623, %v785
  %787 = vadd.xlane.f32.xlu0 %v786
  %v788 = vpop.xlane.xlu0 %787
  %v789 = vsel %vm140, %v626, 0.0
  %v790 = vadd.f32 %v625, %v789
  %791 = vadd.xlane.f32.xlu0 %v790
  %v792 = vpop.xlane.xlu0 %791
  %v793 = vsel %vm140, %v628, 0.0
  %v794 = vadd.f32 %v627, %v793
  %795 = vadd.xlane.f32.xlu0 %v794
  %v796 = vpop.xlane.xlu0 %795
  %v797 = vsel %vm140, %v630, 0.0
  %v798 = vadd.f32 %v629, %v797
  %799 = vadd.xlane.f32.xlu0 %v798
  %v800 = vpop.xlane.xlu0 %799
  %v801 = vsel %vm140, %v632, 0.0
  %v802 = vadd.f32 %v631, %v801
  %803 = vadd.xlane.f32.xlu0 %v802
  %v804 = vpop.xlane.xlu0 %803
  %v805 = vsel %vm140, %v634, 0.0
  %v806 = vadd.f32 %v633, %v805
  %807 = vadd.xlane.f32.xlu0 %v806
  %v808 = vpop.xlane.xlu0 %807
  %v809 = vsel %vm140, %v636, 0.0
  %v810 = vadd.f32 %v635, %v809
  %811 = vadd.xlane.f32.xlu0 %v810
  %v812 = vpop.xlane.xlu0 %811
  %v813 = vsel %vm140, %v638, 0.0
  %v814 = vadd.f32 %v637, %v813
  %815 = vadd.xlane.f32.xlu0 %v814
  %v816 = vpop.xlane.xlu0 %815
  %v817 = vsel %vm140, %v640, 0.0
  %v818 = vadd.f32 %v639, %v817
  %819 = vadd.xlane.f32.xlu0 %v818
  %v820 = vpop.xlane.xlu0 %819
  %v821 = vsel %vm140, %v642, 0.0
  %v822 = vadd.f32 %v641, %v821
  %823 = vadd.xlane.f32.xlu0 %v822
  %v824 = vpop.xlane.xlu0 %823
  %v825 = vsel %vm140, %v644, 0.0
  %v826 = vadd.f32 %v643, %v825
  %827 = vadd.xlane.f32.xlu0 %v826
  %v828 = vpop.xlane.xlu0 %827
  %v829 = vsel %vm140, %v646, 0.0
  %v830 = vadd.f32 %v645, %v829
  %831 = vadd.xlane.f32.xlu0 %v830
  %v832 = vpop.xlane.xlu0 %831
  %v833 = vsel %vm140, %v648, 0.0
  %v834 = vadd.f32 %v647, %v833
  %835 = vadd.xlane.f32.xlu0 %v834
  %v836 = vpop.xlane.xlu0 %835
  %v837 = vsel %vm140, %v650, 0.0
  %v838 = vadd.f32 %v649, %v837
  %839 = vadd.xlane.f32.xlu0 %v838
  %v840 = vpop.xlane.xlu0 %839
  %v841 = vsel %vm140, %v652, 0.0
  %v842 = vadd.f32 %v651, %v841
  %843 = vadd.xlane.f32.xlu0 %v842
  %v844 = vpop.xlane.xlu0 %843
  %v845 = vsel %vm140, %v654, 0.0
  %v846 = vadd.f32 %v653, %v845
  %847 = vadd.xlane.f32.xlu0 %v846
  %v848 = vpop.xlane.xlu0 %847
  %v849 = vsel %vm140, %v656, 0.0
  %v850 = vadd.f32 %v655, %v849
  %851 = vadd.xlane.f32.xlu0 %v850
  %v852 = vpop.xlane.xlu0 %851
  %v853 = vsel %vm140, %v658, 0.0
  %v854 = vadd.f32 %v657, %v853
  %855 = vadd.xlane.f32.xlu0 %v854
  %v856 = vpop.xlane.xlu0 %855
  %v857 = vsel %vm140, %v660, 0.0
  %v858 = vadd.f32 %v659, %v857
  %859 = vadd.xlane.f32.xlu0 %v858
  %v860 = vpop.xlane.xlu0 %859
  %v861 = vsel %vm140, %v662, 0.0
  %v862 = vadd.f32 %v661, %v861
  %863 = vadd.xlane.f32.xlu0 %v862
  %v864 = vpop.xlane.xlu0 %863
  %v865 = vsel %vm140, %v664, 0.0
  %v866 = vadd.f32 %v663, %v865
  %867 = vadd.xlane.f32.xlu0 %v866
  %v868 = vpop.xlane.xlu0 %867
  %v869 = vsel %vm140, %v666, 0.0
  %v870 = vadd.f32 %v665, %v869
  %871 = vadd.xlane.f32.xlu0 %v870
  %v872 = vpop.xlane.xlu0 %871
  %v873 = vsel %vm140, %v668, 0.0
  %v874 = vadd.f32 %v667, %v873
  %875 = vadd.xlane.f32.xlu0 %v874
  %v876 = vpop.xlane.xlu0 %875
  %v877 = vsel %vm140, %v670, 0.0
  %v878 = vadd.f32 %v669, %v877
  %879 = vadd.xlane.f32.xlu0 %v878
  %v880 = vpop.xlane.xlu0 %879
  %v881 = vsel %vm140, %v672, 0.0
  %v882 = vadd.f32 %v671, %v881
  %883 = vadd.xlane.f32.xlu0 %v882
  %v884 = vpop.xlane.xlu0 %883
  %v885 = vsel %vm140, %v674, 0.0
  %v886 = vadd.f32 %v673, %v885
  %887 = vadd.xlane.f32.xlu0 %v886
  %v888 = vpop.xlane.xlu0 %887
  %v889 = vsel %vm140, %v676, 0.0
  %v890 = vadd.f32 %v675, %v889
  %891 = vadd.xlane.f32.xlu0 %v890
  %v892 = vpop.xlane.xlu0 %891
  %v893 = vsel %vm140, %v678, 0.0
  %v894 = vadd.f32 %v677, %v893
  %895 = vadd.xlane.f32.xlu0 %v894
  %v896 = vpop.xlane.xlu0 %895
  %v897 = vsel %vm140, %v680, 0.0
  %v898 = vadd.f32 %v679, %v897
  %899 = vadd.xlane.f32.xlu0 %v898
  %v900 = vpop.xlane.xlu0 %899
  %v901 = vsel %vm140, %v682, 0.0
  %v902 = vadd.f32 %v681, %v901
  %903 = vadd.xlane.f32.xlu0 %v902
  %v904 = vpop.xlane.xlu0 %903
  %v905 = vsel %vm140, %v684, 0.0
  %v906 = vadd.f32 %v683, %v905
  %907 = vadd.xlane.f32.xlu0 %v906
  %v908 = vpop.xlane.xlu0 %907
  %v909 = vsel %vm140, %v686, 0.0
  %v910 = vadd.f32 %v685, %v909
  %911 = vadd.xlane.f32.xlu0 %v910
  %v912 = vpop.xlane.xlu0 %911
  %v913 = vsel %vm140, %v688, 0.0
  %v914 = vadd.f32 %v687, %v913
  %915 = vadd.xlane.f32.xlu0 %v914
  %v916 = vpop.xlane.xlu0 %915
  %v917 = vsel %vm140, %v690, 0.0
  %v918 = vadd.f32 %v689, %v917
  %919 = vadd.xlane.f32.xlu0 %v918
  %v920 = vpop.xlane.xlu0 %919
  %v921 = vsel %vm140, %v692, 0.0
  %v922 = vadd.f32 %v691, %v921
  %923 = vadd.xlane.f32.xlu0 %v922
  %v924 = vpop.xlane.xlu0 %923
  %v925 = vsel %vm140, %v694, 0.0
  %v926 = vadd.f32 %v693, %v925
  %927 = vadd.xlane.f32.xlu0 %v926
  %v928 = vpop.xlane.xlu0 %927
  %v929 = vsel %vm140, %v696, 0.0
  %v930 = vadd.f32 %v695, %v929
  %931 = vadd.xlane.f32.xlu0 %v930
  %v932 = vpop.xlane.xlu0 %931
  %v933 = vsel %vm140, %v698, 0.0
  %v934 = vadd.f32 %v697, %v933
  %935 = vadd.xlane.f32.xlu0 %v934
  %v936 = vpop.xlane.xlu0 %935
  %v937 = vsel %vm140, %v700, 0.0
  %v938 = vadd.f32 %v699, %v937
  %939 = vadd.xlane.f32.xlu0 %v938
  %v940 = vpop.xlane.xlu0 %939
  %v941 = vsel %vm140, %v702, 0.0
  %v942 = vadd.f32 %v701, %v941
  %943 = vadd.xlane.f32.xlu0 %v942
  %v944 = vpop.xlane.xlu0 %943
  %v945 = vsel %vm140, %v704, 0.0
  %v946 = vadd.f32 %v703, %v945
  %947 = vadd.xlane.f32.xlu0 %v946
  %v948 = vpop.xlane.xlu0 %947
  %v949 = vsel %vm140, %v706, 0.0
  %v950 = vadd.f32 %v705, %v949
  %951 = vadd.xlane.f32.xlu0 %v950
  %v952 = vpop.xlane.xlu0 %951
  %v953 = vsel %vm140, %v708, 0.0
  %v954 = vadd.f32 %v707, %v953
  %955 = vadd.xlane.f32.xlu0 %v954
  %v956 = vpop.xlane.xlu0 %955
  %v957 = vsel %vm140, %v710, 0.0
  %v958 = vadd.f32 %v709, %v957
  %959 = vadd.xlane.f32.xlu0 %v958
  %v960 = vpop.xlane.xlu0 %959
  %v961 = vsel %vm140, %v712, 0.0
  %v962 = vadd.f32 %v711, %v961
  %963 = vadd.xlane.f32.xlu0 %v962
  %v964 = vpop.xlane.xlu0 %963
  %v965 = vsel %vm140, %v714, 0.0
  %v966 = vadd.f32 %v713, %v965
  %967 = vadd.xlane.f32.xlu0 %v966
  %v968 = vpop.xlane.xlu0 %967
  %v969 = vsel %vm140, %v716, 0.0
  %v970 = vadd.f32 %v715, %v969
  %971 = vadd.xlane.f32.xlu0 %v970
  %v972 = vpop.xlane.xlu0 %971
  %v973 = vmul.f32 %v720, 0.0051020407
  %v974 = vmul.f32 %v724, 0.0051020407
  %v975 = vmul.f32 %v728, 0.0051020407
  %v976 = vmul.f32 %v732, 0.0051020407
  %v977 = vmul.f32 %v736, 0.0051020407
  %v978 = vmul.f32 %v740, 0.0051020407
  %v979 = vmul.f32 %v744, 0.0051020407
  %v980 = vmul.f32 %v748, 0.0051020407
  %v981 = vmul.f32 %v752, 0.0051020407
  %v982 = vmul.f32 %v756, 0.0051020407
  %v983 = vmul.f32 %v760, 0.0051020407
  %v984 = vmul.f32 %v764, 0.0051020407
  %v985 = vmul.f32 %v768, 0.0051020407
  %v986 = vmul.f32 %v772, 0.0051020407
  %v987 = vmul.f32 %v776, 0.0051020407
  %v988 = vmul.f32 %v780, 0.0051020407
  %v989 = vmul.f32 %v784, 0.0051020407
  %v990 = vmul.f32 %v788, 0.0051020407
  %v991 = vmul.f32 %v792, 0.0051020407
  %v992 = vmul.f32 %v796, 0.0051020407
  %v993 = vmul.f32 %v800, 0.0051020407
  %v994 = vmul.f32 %v804, 0.0051020407
  %v995 = vmul.f32 %v808, 0.0051020407
  %v996 = vmul.f32 %v812, 0.0051020407
  %v997 = vmul.f32 %v816, 0.0051020407
  %v998 = vmul.f32 %v820, 0.0051020407
  %v999 = vmul.f32 %v824, 0.0051020407
  %v1000 = vmul.f32 %v828, 0.0051020407
  %v1001 = vmul.f32 %v832, 0.0051020407
  %v1002 = vmul.f32 %v836, 0.0051020407
  %v1003 = vmul.f32 %v840, 0.0051020407
  %v1004 = vmul.f32 %v844, 0.0051020407
  %v1005 = vmul.f32 %v848, 0.0051020407
  %v1006 = vmul.f32 %v852, 0.0051020407
  %v1007 = vmul.f32 %v856, 0.0051020407
  %v1008 = vmul.f32 %v860, 0.0051020407
  %v1009 = vmul.f32 %v864, 0.0051020407
  %v1010 = vmul.f32 %v868, 0.0051020407
  %v1011 = vmul.f32 %v872, 0.0051020407
  %v1012 = vmul.f32 %v876, 0.0051020407
  %v1013 = vmul.f32 %v880, 0.0051020407
  %v1014 = vmul.f32 %v884, 0.0051020407
  %v1015 = vmul.f32 %v888, 0.0051020407
  %v1016 = vmul.f32 %v892, 0.0051020407
  %v1017 = vmul.f32 %v896, 0.0051020407
  %v1018 = vmul.f32 %v900, 0.0051020407
  %v1019 = vmul.f32 %v904, 0.0051020407
  %v1020 = vmul.f32 %v908, 0.0051020407
  %v1021 = vmul.f32 %v912, 0.0051020407
  %v1022 = vmul.f32 %v916, 0.0051020407
  %v1023 = vmul.f32 %v920, 0.0051020407
  %v1024 = vmul.f32 %v924, 0.0051020407
  %v1025 = vmul.f32 %v928, 0.0051020407
  %v1026 = vmul.f32 %v932, 0.0051020407
  %v1027 = vmul.f32 %v936, 0.0051020407
  %v1028 = vmul.f32 %v940, 0.0051020407
  %v1029 = vmul.f32 %v944, 0.0051020407
  %v1030 = vmul.f32 %v948, 0.0051020407
  %v1031 = vmul.f32 %v952, 0.0051020407
  %v1032 = vmul.f32 %v956, 0.0051020407
  %v1033 = vmul.f32 %v960, 0.0051020407
  %v1034 = vmul.f32 %v964, 0.0051020407
  %v1035 = vmul.f32 %v968, 0.0051020407
  %v1036 = vmul.f32 %v972, 0.0051020407
  %v1037 = vadd.f32 %v973, 1e-05
  %v1038 = vadd.f32 %v974, 1e-05
  %v1039 = vadd.f32 %v975, 1e-05
  %v1040 = vadd.f32 %v976, 1e-05
  %v1041 = vadd.f32 %v977, 1e-05
  %v1042 = vadd.f32 %v978, 1e-05
  %v1043 = vadd.f32 %v979, 1e-05
  %v1044 = vadd.f32 %v980, 1e-05
  %v1045 = vadd.f32 %v981, 1e-05
  %v1046 = vadd.f32 %v982, 1e-05
  %v1047 = vadd.f32 %v983, 1e-05
  %v1048 = vadd.f32 %v984, 1e-05
  %v1049 = vadd.f32 %v985, 1e-05
  %v1050 = vadd.f32 %v986, 1e-05
  %v1051 = vadd.f32 %v987, 1e-05
  %v1052 = vadd.f32 %v988, 1e-05
  %v1053 = vadd.f32 %v989, 1e-05
  %v1054 = vadd.f32 %v990, 1e-05
  %v1055 = vadd.f32 %v991, 1e-05
  %v1056 = vadd.f32 %v992, 1e-05
  %v1057 = vadd.f32 %v993, 1e-05
  %v1058 = vadd.f32 %v994, 1e-05
  %v1059 = vadd.f32 %v995, 1e-05
  %v1060 = vadd.f32 %v996, 1e-05
  %v1061 = vadd.f32 %v997, 1e-05
  %v1062 = vadd.f32 %v998, 1e-05
  %v1063 = vadd.f32 %v999, 1e-05
  %v1064 = vadd.f32 %v1000, 1e-05
  %v1065 = vadd.f32 %v1001, 1e-05
  %v1066 = vadd.f32 %v1002, 1e-05
  %v1067 = vadd.f32 %v1003, 1e-05
  %v1068 = vadd.f32 %v1004, 1e-05
  %v1069 = vadd.f32 %v1005, 1e-05
  %v1070 = vadd.f32 %v1006, 1e-05
  %v1071 = vadd.f32 %v1007, 1e-05
  %v1072 = vadd.f32 %v1008, 1e-05
  %v1073 = vadd.f32 %v1009, 1e-05
  %v1074 = vadd.f32 %v1010, 1e-05
  %v1075 = vadd.f32 %v1011, 1e-05
  %v1076 = vadd.f32 %v1012, 1e-05
  %v1077 = vadd.f32 %v1013, 1e-05
  %v1078 = vadd.f32 %v1014, 1e-05
  %v1079 = vadd.f32 %v1015, 1e-05
  %v1080 = vadd.f32 %v1016, 1e-05
  %v1081 = vadd.f32 %v1017, 1e-05
  %v1082 = vadd.f32 %v1018, 1e-05
  %v1083 = vadd.f32 %v1019, 1e-05
  %v1084 = vadd.f32 %v1020, 1e-05
  %v1085 = vadd.f32 %v1021, 1e-05
  %v1086 = vadd.f32 %v1022, 1e-05
  %v1087 = vadd.f32 %v1023, 1e-05
  %v1088 = vadd.f32 %v1024, 1e-05
  %v1089 = vadd.f32 %v1025, 1e-05
  %v1090 = vadd.f32 %v1026, 1e-05
  %v1091 = vadd.f32 %v1027, 1e-05
  %v1092 = vadd.f32 %v1028, 1e-05
  %v1093 = vadd.f32 %v1029, 1e-05
  %v1094 = vadd.f32 %v1030, 1e-05
  %v1095 = vadd.f32 %v1031, 1e-05
  %v1096 = vadd.f32 %v1032, 1e-05
  %v1097 = vadd.f32 %v1033, 1e-05
  %v1098 = vadd.f32 %v1034, 1e-05
  %v1099 = vadd.f32 %v1035, 1e-05
  %v1100 = vadd.f32 %v1036, 1e-05
  %v1101 = vrsqrt.pop %v1037
  %v1102 = vrsqrt.pop %v1038
  %v1103 = vrsqrt.pop %v1039
  %v1104 = vrsqrt.pop %v1040
  %v1105 = vrsqrt.pop %v1041
  %v1106 = vrsqrt.pop %v1042
  %v1107 = vrsqrt.pop %v1043
  %v1108 = vrsqrt.pop %v1044
  %v1109 = vrsqrt.pop %v1045
  %v1110 = vrsqrt.pop %v1046
  %v1111 = vrsqrt.pop %v1047
  %v1112 = vrsqrt.pop %v1048
  %v1113 = vrsqrt.pop %v1049
  %v1114 = vrsqrt.pop %v1050
  %v1115 = vrsqrt.pop %v1051
  %v1116 = vrsqrt.pop %v1052
  %v1117 = vrsqrt.pop %v1053
  %v1118 = vrsqrt.pop %v1054
  %v1119 = vrsqrt.pop %v1055
  %v1120 = vrsqrt.pop %v1056
  %v1121 = vrsqrt.pop %v1057
  %v1122 = vrsqrt.pop %v1058
  %v1123 = vrsqrt.pop %v1059
  %v1124 = vrsqrt.pop %v1060
  %v1125 = vrsqrt.pop %v1061
  %v1126 = vrsqrt.pop %v1062
  %v1127 = vrsqrt.pop %v1063
  %v1128 = vrsqrt.pop %v1064
  %v1129 = vrsqrt.pop %v1065
  %v1130 = vrsqrt.pop %v1066
  %v1131 = vrsqrt.pop %v1067
  %v1132 = vrsqrt.pop %v1068
  %v1133 = vrsqrt.pop %v1069
  %v1134 = vrsqrt.pop %v1070
  %v1135 = vrsqrt.pop %v1071
  %v1136 = vrsqrt.pop %v1072
  %v1137 = vrsqrt.pop %v1073
  %v1138 = vrsqrt.pop %v1074
  %v1139 = vrsqrt.pop %v1075
  %v1140 = vrsqrt.pop %v1076
  %v1141 = vrsqrt.pop %v1077
  %v1142 = vrsqrt.pop %v1078
  %v1143 = vrsqrt.pop %v1079
  %v1144 = vrsqrt.pop %v1080
  %v1145 = vrsqrt.pop %v1081
  %v1146 = vrsqrt.pop %v1082
  %v1147 = vrsqrt.pop %v1083
  %v1148 = vrsqrt.pop %v1084
  %v1149 = vrsqrt.pop %v1085
  %v1150 = vrsqrt.pop %v1086
  %v1151 = vrsqrt.pop %v1087
  %v1152 = vrsqrt.pop %v1088
  %v1153 = vrsqrt.pop %v1089
  %v1154 = vrsqrt.pop %v1090
  %v1155 = vrsqrt.pop %v1091
  %v1156 = vrsqrt.pop %v1092
  %v1157 = vrsqrt.pop %v1093
  %v1158 = vrsqrt.pop %v1094
  %v1159 = vrsqrt.pop %v1095
  %v1160 = vrsqrt.pop %v1096
  %v1161 = vrsqrt.pop %v1097
  %v1162 = vrsqrt.pop %v1098
  %v1163 = vrsqrt.pop %v1099
  %v1164 = vrsqrt.pop %v1100
  %s1165 = scalar_lea.vmem %s1, %s11
  %v1166 = vld [vmem:[%s1165] sm:$0xff]
  %v1167 = vld [vmem:[%s1165 + $0x8] sm:$0xff]
  %v1168 = vld [vmem:[%s1165 + $0x10] sm:$0xff]
  %v1169 = vld [vmem:[%s1165 + $0x18] sm:$0xff]
  %v1170 = vld [vmem:[%s1165 + $0x20] sm:$0xff]
  %v1171 = vld [vmem:[%s1165 + $0x28] sm:$0xff]
  %v1172 = vld [vmem:[%s1165 + $0x30] sm:$0xff]
  %v1173 = vld [vmem:[%s1165 + $0x38] sm:$0xff]
  %v1174 = vld [vmem:[%s1165 + $0x40] sm:$0xff]
  %v1175 = vld [vmem:[%s1165 + $0x48] sm:$0xff]
  %v1176 = vld [vmem:[%s1165 + $0x50] sm:$0xff]
  %v1177 = vld [vmem:[%s1165 + $0x58] sm:$0xff]
  %v1178 = vld [vmem:[%s1165 + $0x60] sm:$0xff]
  %v1179 = vld [vmem:[%s1165 + $0x68] sm:$0xff]
  %v1180 = vld [vmem:[%s1165 + $0x70] sm:$0xff]
  %v1181 = vld [vmem:[%s1165 + $0x78] sm:$0xff]
  %v1182 = vld [vmem:[%s1165 + $0x80] sm:$0xff]
  %v1183 = vld [vmem:[%s1165 + $0x88] sm:$0xff]
  %v1184 = vld [vmem:[%s1165 + $0x90] sm:$0xff]
  %v1185 = vld [vmem:[%s1165 + $0x98] sm:$0xff]
  %v1186 = vld [vmem:[%s1165 + $0xa0] sm:$0xff]
  %v1187 = vld [vmem:[%s1165 + $0xa8] sm:$0xff]
  %v1188 = vld [vmem:[%s1165 + $0xb0] sm:$0xff]
  %v1189 = vld [vmem:[%s1165 + $0xb8] sm:$0xff]
  %v1190 = vld [vmem:[%s1165 + $0xc0] sm:$0xff]
  %v1191 = vld [vmem:[%s1165 + $0xc8] sm:$0xff]
  %v1192 = vld [vmem:[%s1165 + $0xd0] sm:$0xff]
  %v1193 = vld [vmem:[%s1165 + $0xd8] sm:$0xff]
  %v1194 = vld [vmem:[%s1165 + $0xe0] sm:$0xff]
  %v1195 = vld [vmem:[%s1165 + $0xe8] sm:$0xff]
  %v1196 = vld [vmem:[%s1165 + $0xf0] sm:$0xff]
  %v1197 = vld [vmem:[%s1165 + $0xf8] sm:$0xff]
  %v1198 = vld [vmem:[%s1165 + $0x100] sm:$0xff]
  %v1199 = vld [vmem:[%s1165 + $0x108] sm:$0xff]
  %v1200 = vld [vmem:[%s1165 + $0x110] sm:$0xff]
  %v1201 = vld [vmem:[%s1165 + $0x118] sm:$0xff]
  %v1202 = vld [vmem:[%s1165 + $0x120] sm:$0xff]
  %v1203 = vld [vmem:[%s1165 + $0x128] sm:$0xff]
  %v1204 = vld [vmem:[%s1165 + $0x130] sm:$0xff]
  %v1205 = vld [vmem:[%s1165 + $0x138] sm:$0xff]
  %v1206 = vld [vmem:[%s1165 + $0x140] sm:$0xff]
  %v1207 = vld [vmem:[%s1165 + $0x148] sm:$0xff]
  %v1208 = vld [vmem:[%s1165 + $0x150] sm:$0xff]
  %v1209 = vld [vmem:[%s1165 + $0x158] sm:$0xff]
  %v1210 = vld [vmem:[%s1165 + $0x160] sm:$0xff]
  %v1211 = vld [vmem:[%s1165 + $0x168] sm:$0xff]
  %v1212 = vld [vmem:[%s1165 + $0x170] sm:$0xff]
  %v1213 = vld [vmem:[%s1165 + $0x178] sm:$0xff]
  %v1214 = vld [vmem:[%s1165 + $0x180] sm:$0xff]
  %v1215 = vld [vmem:[%s1165 + $0x188] sm:$0xff]
  %v1216 = vld [vmem:[%s1165 + $0x190] sm:$0xff]
  %v1217 = vld [vmem:[%s1165 + $0x198] sm:$0xff]
  %v1218 = vld [vmem:[%s1165 + $0x1a0] sm:$0xff]
  %v1219 = vld [vmem:[%s1165 + $0x1a8] sm:$0xff]
  %v1220 = vld [vmem:[%s1165 + $0x1b0] sm:$0xff]
  %v1221 = vld [vmem:[%s1165 + $0x1b8] sm:$0xff]
  %v1222 = vld [vmem:[%s1165 + $0x1c0] sm:$0xff]
  %v1223 = vld [vmem:[%s1165 + $0x1c8] sm:$0xff]
  %v1224 = vld [vmem:[%s1165 + $0x1d0] sm:$0xff]
  %v1225 = vld [vmem:[%s1165 + $0x1d8] sm:$0xff]
  %v1226 = vld [vmem:[%s1165 + $0x1e0] sm:$0xff]
  %v1227 = vld [vmem:[%s1165 + $0x1e8] sm:$0xff]
  %v1228 = vld [vmem:[%s1165 + $0x1f0] sm:$0xff]
  %v1229 = vld [vmem:[%s1165 + $0x1f8] sm:$0xff]
  %v1230 = vmul.f32 %v1166, %v1101
  %v1231 = vmul.f32 %v1167, %v1102
  %v1232 = vmul.f32 %v1168, %v1103
  %v1233 = vmul.f32 %v1169, %v1104
  %v1234 = vmul.f32 %v1170, %v1105
  %v1235 = vmul.f32 %v1171, %v1106
  %v1236 = vmul.f32 %v1172, %v1107
  %v1237 = vmul.f32 %v1173, %v1108
  %v1238 = vmul.f32 %v1174, %v1109
  %v1239 = vmul.f32 %v1175, %v1110
  %v1240 = vmul.f32 %v1176, %v1111
  %v1241 = vmul.f32 %v1177, %v1112
  %v1242 = vmul.f32 %v1178, %v1113
  %v1243 = vmul.f32 %v1179, %v1114
  %v1244 = vmul.f32 %v1180, %v1115
  %v1245 = vmul.f32 %v1181, %v1116
  %v1246 = vmul.f32 %v1182, %v1117
  %v1247 = vmul.f32 %v1183, %v1118
  %v1248 = vmul.f32 %v1184, %v1119
  %v1249 = vmul.f32 %v1185, %v1120
  %v1250 = vmul.f32 %v1186, %v1121
  %v1251 = vmul.f32 %v1187, %v1122
  %v1252 = vmul.f32 %v1188, %v1123
  %v1253 = vmul.f32 %v1189, %v1124
  %v1254 = vmul.f32 %v1190, %v1125
  %v1255 = vmul.f32 %v1191, %v1126
  %v1256 = vmul.f32 %v1192, %v1127
  %v1257 = vmul.f32 %v1193, %v1128
  %v1258 = vmul.f32 %v1194, %v1129
  %v1259 = vmul.f32 %v1195, %v1130
  %v1260 = vmul.f32 %v1196, %v1131
  %v1261 = vmul.f32 %v1197, %v1132
  %v1262 = vmul.f32 %v1198, %v1133
  %v1263 = vmul.f32 %v1199, %v1134
  %v1264 = vmul.f32 %v1200, %v1135
  %v1265 = vmul.f32 %v1201, %v1136
  %v1266 = vmul.f32 %v1202, %v1137
  %v1267 = vmul.f32 %v1203, %v1138
  %v1268 = vmul.f32 %v1204, %v1139
  %v1269 = vmul.f32 %v1205, %v1140
  %v1270 = vmul.f32 %v1206, %v1141
  %v1271 = vmul.f32 %v1207, %v1142
  %v1272 = vmul.f32 %v1208, %v1143
  %v1273 = vmul.f32 %v1209, %v1144
  %v1274 = vmul.f32 %v1210, %v1145
  %v1275 = vmul.f32 %v1211, %v1146
  %v1276 = vmul.f32 %v1212, %v1147
  %v1277 = vmul.f32 %v1213, %v1148
  %v1278 = vmul.f32 %v1214, %v1149
  %v1279 = vmul.f32 %v1215, %v1150
  %v1280 = vmul.f32 %v1216, %v1151
  %v1281 = vmul.f32 %v1217, %v1152
  %v1282 = vmul.f32 %v1218, %v1153
  %v1283 = vmul.f32 %v1219, %v1154
  %v1284 = vmul.f32 %v1220, %v1155
  %v1285 = vmul.f32 %v1221, %v1156
  %v1286 = vmul.f32 %v1222, %v1157
  %v1287 = vmul.f32 %v1223, %v1158
  %v1288 = vmul.f32 %v1224, %v1159
  %v1289 = vmul.f32 %v1225, %v1160
  %v1290 = vmul.f32 %v1226, %v1161
  %v1291 = vmul.f32 %v1227, %v1162
  %v1292 = vmul.f32 %v1228, %v1163
  %v1293 = vmul.f32 %v1229, %v1164
  %v1294 = vmul.f32 %v397, %v1230
  %v1295 = vmul.f32 %v398, %v1231
  %v1296 = vmul.f32 %v399, %v1232
  %v1297 = vmul.f32 %v400, %v1233
  %v1298 = vmul.f32 %v401, %v1234
  %v1299 = vmul.f32 %v402, %v1235
  %v1300 = vmul.f32 %v403, %v1236
  %v1301 = vmul.f32 %v404, %v1237
  %v1302 = vmul.f32 %v405, %v1238
  %v1303 = vmul.f32 %v406, %v1239
  %v1304 = vmul.f32 %v407, %v1240
  %v1305 = vmul.f32 %v408, %v1241
  %v1306 = vmul.f32 %v409, %v1242
  %v1307 = vmul.f32 %v410, %v1243
  %v1308 = vmul.f32 %v411, %v1244
  %v1309 = vmul.f32 %v412, %v1245
  %v1310 = vmul.f32 %v413, %v1246
  %v1311 = vmul.f32 %v414, %v1247
  %v1312 = vmul.f32 %v415, %v1248
  %v1313 = vmul.f32 %v416, %v1249
  %v1314 = vmul.f32 %v417, %v1250
  %v1315 = vmul.f32 %v418, %v1251
  %v1316 = vmul.f32 %v419, %v1252
  %v1317 = vmul.f32 %v420, %v1253
  %v1318 = vmul.f32 %v421, %v1254
  %v1319 = vmul.f32 %v422, %v1255
  %v1320 = vmul.f32 %v423, %v1256
  %v1321 = vmul.f32 %v424, %v1257
  %v1322 = vmul.f32 %v425, %v1258
  %v1323 = vmul.f32 %v426, %v1259
  %v1324 = vmul.f32 %v427, %v1260
  %v1325 = vmul.f32 %v428, %v1261
  %v1326 = vmul.f32 %v429, %v1262
  %v1327 = vmul.f32 %v430, %v1263
  %v1328 = vmul.f32 %v431, %v1264
  %v1329 = vmul.f32 %v432, %v1265
  %v1330 = vmul.f32 %v433, %v1266
  %v1331 = vmul.f32 %v434, %v1267
  %v1332 = vmul.f32 %v435, %v1268
  %v1333 = vmul.f32 %v436, %v1269
  %v1334 = vmul.f32 %v437, %v1270
  %v1335 = vmul.f32 %v438, %v1271
  %v1336 = vmul.f32 %v439, %v1272
  %v1337 = vmul.f32 %v440, %v1273
  %v1338 = vmul.f32 %v441, %v1274
  %v1339 = vmul.f32 %v442, %v1275
  %v1340 = vmul.f32 %v443, %v1276
  %v1341 = vmul.f32 %v444, %v1277
  %v1342 = vmul.f32 %v445, %v1278
  %v1343 = vmul.f32 %v446, %v1279
  %v1344 = vmul.f32 %v447, %v1280
  %v1345 = vmul.f32 %v448, %v1281
  %v1346 = vmul.f32 %v449, %v1282
  %v1347 = vmul.f32 %v450, %v1283
  %v1348 = vmul.f32 %v451, %v1284
  %v1349 = vmul.f32 %v452, %v1285
  %v1350 = vmul.f32 %v453, %v1286
  %v1351 = vmul.f32 %v454, %v1287
  %v1352 = vmul.f32 %v455, %v1288
  %v1353 = vmul.f32 %v456, %v1289
  %v1354 = vmul.f32 %v457, %v1290
  %v1355 = vmul.f32 %v458, %v1291
  %v1356 = vmul.f32 %v459, %v1292
  %v1357 = vmul.f32 %v460, %v1293
  %1422 = vrot.lane.b32.xlu0 %v1294, 1
  %v1423 = vpop.permute.xlu0 %1422
  %1424 = vrot.lane.b32.xlu0 %v1295, 1
  %v1425 = vpop.permute.xlu0 %1424
  %1426 = vrot.lane.b32.xlu0 %v1296, 1
  %v1427 = vpop.permute.xlu0 %1426
  %1428 = vrot.lane.b32.xlu0 %v1297, 1
  %v1429 = vpop.permute.xlu0 %1428
  %1430 = vrot.lane.b32.xlu0 %v1298, 1
  %v1431 = vpop.permute.xlu0 %1430
  %1432 = vrot.lane.b32.xlu0 %v1299, 1
  %v1433 = vpop.permute.xlu0 %1432
  %1434 = vrot.lane.b32.xlu0 %v1300, 1
  %v1435 = vpop.permute.xlu0 %1434
  %1436 = vrot.lane.b32.xlu0 %v1301, 1
  %v1437 = vpop.permute.xlu0 %1436
  %1438 = vrot.lane.b32.xlu0 %v1302, 1
  %v1439 = vpop.permute.xlu0 %1438
  %1440 = vrot.lane.b32.xlu0 %v1303, 1
  %v1441 = vpop.permute.xlu0 %1440
  %1442 = vrot.lane.b32.xlu0 %v1304, 1
  %v1443 = vpop.permute.xlu0 %1442
  %1444 = vrot.lane.b32.xlu0 %v1305, 1
  %v1445 = vpop.permute.xlu0 %1444
  %1446 = vrot.lane.b32.xlu0 %v1306, 1
  %v1447 = vpop.permute.xlu0 %1446
  %1448 = vrot.lane.b32.xlu0 %v1307, 1
  %v1449 = vpop.permute.xlu0 %1448
  %1450 = vrot.lane.b32.xlu0 %v1308, 1
  %v1451 = vpop.permute.xlu0 %1450
  %1452 = vrot.lane.b32.xlu0 %v1309, 1
  %v1453 = vpop.permute.xlu0 %1452
  %1454 = vrot.lane.b32.xlu0 %v1310, 1
  %v1455 = vpop.permute.xlu0 %1454
  %1456 = vrot.lane.b32.xlu0 %v1311, 1
  %v1457 = vpop.permute.xlu0 %1456
  %1458 = vrot.lane.b32.xlu0 %v1312, 1
  %v1459 = vpop.permute.xlu0 %1458
  %1460 = vrot.lane.b32.xlu0 %v1313, 1
  %v1461 = vpop.permute.xlu0 %1460
  %1462 = vrot.lane.b32.xlu0 %v1314, 1
  %v1463 = vpop.permute.xlu0 %1462
  %1464 = vrot.lane.b32.xlu0 %v1315, 1
  %v1465 = vpop.permute.xlu0 %1464
  %1466 = vrot.lane.b32.xlu0 %v1316, 1
  %v1467 = vpop.permute.xlu0 %1466
  %1468 = vrot.lane.b32.xlu0 %v1317, 1
  %v1469 = vpop.permute.xlu0 %1468
  %1470 = vrot.lane.b32.xlu0 %v1318, 1
  %v1471 = vpop.permute.xlu0 %1470
  %1472 = vrot.lane.b32.xlu0 %v1319, 1
  %v1473 = vpop.permute.xlu0 %1472
  %1474 = vrot.lane.b32.xlu0 %v1320, 1
  %v1475 = vpop.permute.xlu0 %1474
  %1476 = vrot.lane.b32.xlu0 %v1321, 1
  %v1477 = vpop.permute.xlu0 %1476
  %1478 = vrot.lane.b32.xlu0 %v1322, 1
  %v1479 = vpop.permute.xlu0 %1478
  %1480 = vrot.lane.b32.xlu0 %v1323, 1
  %v1481 = vpop.permute.xlu0 %1480
  %1482 = vrot.lane.b32.xlu0 %v1324, 1
  %v1483 = vpop.permute.xlu0 %1482
  %1484 = vrot.lane.b32.xlu0 %v1325, 1
  %v1485 = vpop.permute.xlu0 %1484
  %1486 = vrot.lane.b32.xlu0 %v1326, 1
  %v1487 = vpop.permute.xlu0 %1486
  %1488 = vrot.lane.b32.xlu0 %v1327, 1
  %v1489 = vpop.permute.xlu0 %1488
  %1490 = vrot.lane.b32.xlu0 %v1328, 1
  %v1491 = vpop.permute.xlu0 %1490
  %1492 = vrot.lane.b32.xlu0 %v1329, 1
  %v1493 = vpop.permute.xlu0 %1492
  %1494 = vrot.lane.b32.xlu0 %v1330, 1
  %v1495 = vpop.permute.xlu0 %1494
  %1496 = vrot.lane.b32.xlu0 %v1331, 1
  %v1497 = vpop.permute.xlu0 %1496
  %1498 = vrot.lane.b32.xlu0 %v1332, 1
  %v1499 = vpop.permute.xlu0 %1498
  %1500 = vrot.lane.b32.xlu0 %v1333, 1
  %v1501 = vpop.permute.xlu0 %1500
  %1502 = vrot.lane.b32.xlu0 %v1334, 1
  %v1503 = vpop.permute.xlu0 %1502
  %1504 = vrot.lane.b32.xlu0 %v1335, 1
  %v1505 = vpop.permute.xlu0 %1504
  %1506 = vrot.lane.b32.xlu0 %v1336, 1
  %v1507 = vpop.permute.xlu0 %1506
  %1508 = vrot.lane.b32.xlu0 %v1337, 1
  %v1509 = vpop.permute.xlu0 %1508
  %1510 = vrot.lane.b32.xlu0 %v1338, 1
  %v1511 = vpop.permute.xlu0 %1510
  %1512 = vrot.lane.b32.xlu0 %v1339, 1
  %v1513 = vpop.permute.xlu0 %1512
  %1514 = vrot.lane.b32.xlu0 %v1340, 1
  %v1515 = vpop.permute.xlu0 %1514
  %1516 = vrot.lane.b32.xlu0 %v1341, 1
  %v1517 = vpop.permute.xlu0 %1516
  %1518 = vrot.lane.b32.xlu0 %v1342, 1
  %v1519 = vpop.permute.xlu0 %1518
  %1520 = vrot.lane.b32.xlu0 %v1343, 1
  %v1521 = vpop.permute.xlu0 %1520
  %1522 = vrot.lane.b32.xlu0 %v1344, 1
  %v1523 = vpop.permute.xlu0 %1522
  %1524 = vrot.lane.b32.xlu0 %v1345, 1
  %v1525 = vpop.permute.xlu0 %1524
  %1526 = vrot.lane.b32.xlu0 %v1346, 1
  %v1527 = vpop.permute.xlu0 %1526
  %1528 = vrot.lane.b32.xlu0 %v1347, 1
  %v1529 = vpop.permute.xlu0 %1528
  %1530 = vrot.lane.b32.xlu0 %v1348, 1
  %v1531 = vpop.permute.xlu0 %1530
  %1532 = vrot.lane.b32.xlu0 %v1349, 1
  %v1533 = vpop.permute.xlu0 %1532
  %1534 = vrot.lane.b32.xlu0 %v1350, 1
  %v1535 = vpop.permute.xlu0 %1534
  %1536 = vrot.lane.b32.xlu0 %v1351, 1
  %v1537 = vpop.permute.xlu0 %1536
  %1538 = vrot.lane.b32.xlu0 %v1352, 1
  %v1539 = vpop.permute.xlu0 %1538
  %1540 = vrot.lane.b32.xlu0 %v1353, 1
  %v1541 = vpop.permute.xlu0 %1540
  %1542 = vrot.lane.b32.xlu0 %v1354, 1
  %v1543 = vpop.permute.xlu0 %1542
  %1544 = vrot.lane.b32.xlu0 %v1355, 1
  %v1545 = vpop.permute.xlu0 %1544
  %1546 = vrot.lane.b32.xlu0 %v1356, 1
  %v1547 = vpop.permute.xlu0 %1546
  %1548 = vrot.lane.b32.xlu0 %v1357, 1
  %v1549 = vpop.permute.xlu0 %1548
  %v1614 = vsub.f32 %v1166, %v1423
  %v1615 = vsub.f32 %v1167, %v1425
  %v1616 = vsub.f32 %v1168, %v1427
  %v1617 = vsub.f32 %v1169, %v1429
  %v1618 = vsub.f32 %v1170, %v1431
  %v1619 = vsub.f32 %v1171, %v1433
  %v1620 = vsub.f32 %v1172, %v1435
  %v1621 = vsub.f32 %v1173, %v1437
  %v1622 = vsub.f32 %v1174, %v1439
  %v1623 = vsub.f32 %v1175, %v1441
  %v1624 = vsub.f32 %v1176, %v1443
  %v1625 = vsub.f32 %v1177, %v1445
  %v1626 = vsub.f32 %v1178, %v1447
  %v1627 = vsub.f32 %v1179, %v1449
  %v1628 = vsub.f32 %v1180, %v1451
  %v1629 = vsub.f32 %v1181, %v1453
  %v1630 = vsub.f32 %v1182, %v1455
  %v1631 = vsub.f32 %v1183, %v1457
  %v1632 = vsub.f32 %v1184, %v1459
  %v1633 = vsub.f32 %v1185, %v1461
  %v1634 = vsub.f32 %v1186, %v1463
  %v1635 = vsub.f32 %v1187, %v1465
  %v1636 = vsub.f32 %v1188, %v1467
  %v1637 = vsub.f32 %v1189, %v1469
  %v1638 = vsub.f32 %v1190, %v1471
  %v1639 = vsub.f32 %v1191, %v1473
  %v1640 = vsub.f32 %v1192, %v1475
  %v1641 = vsub.f32 %v1193, %v1477
  %v1642 = vsub.f32 %v1194, %v1479
  %v1643 = vsub.f32 %v1195, %v1481
  %v1644 = vsub.f32 %v1196, %v1483
  %v1645 = vsub.f32 %v1197, %v1485
  %v1646 = vsub.f32 %v1198, %v1487
  %v1647 = vsub.f32 %v1199, %v1489
  %v1648 = vsub.f32 %v1200, %v1491
  %v1649 = vsub.f32 %v1201, %v1493
  %v1650 = vsub.f32 %v1202, %v1495
  %v1651 = vsub.f32 %v1203, %v1497
  %v1652 = vsub.f32 %v1204, %v1499
  %v1653 = vsub.f32 %v1205, %v1501
  %v1654 = vsub.f32 %v1206, %v1503
  %v1655 = vsub.f32 %v1207, %v1505
  %v1656 = vsub.f32 %v1208, %v1507
  %v1657 = vsub.f32 %v1209, %v1509
  %v1658 = vsub.f32 %v1210, %v1511
  %v1659 = vsub.f32 %v1211, %v1513
  %v1660 = vsub.f32 %v1212, %v1515
  %v1661 = vsub.f32 %v1213, %v1517
  %v1662 = vsub.f32 %v1214, %v1519
  %v1663 = vsub.f32 %v1215, %v1521
  %v1664 = vsub.f32 %v1216, %v1523
  %v1665 = vsub.f32 %v1217, %v1525
  %v1666 = vsub.f32 %v1218, %v1527
  %v1667 = vsub.f32 %v1219, %v1529
  %v1668 = vsub.f32 %v1220, %v1531
  %v1669 = vsub.f32 %v1221, %v1533
  %v1670 = vsub.f32 %v1222, %v1535
  %v1671 = vsub.f32 %v1223, %v1537
  %v1672 = vsub.f32 %v1224, %v1539
  %v1673 = vsub.f32 %v1225, %v1541
  %v1674 = vsub.f32 %v1226, %v1543
  %v1675 = vsub.f32 %v1227, %v1545
  %v1676 = vsub.f32 %v1228, %v1547
  %v1677 = vsub.f32 %v1229, %v1549
  %1679 = vset.pattern.permute.xlu0 0
  %1680 = vperm.xlu0 %1679, %v1230
  %v1681 = vpop.permute.xlu0 %1680
  %1684 = vset.pattern.permute.xlu0 0
  %1685 = vperm.xlu0 %1684, %v1231
  %v1686 = vpop.permute.xlu0 %1685
  %1689 = vset.pattern.permute.xlu0 0
  %1690 = vperm.xlu0 %1689, %v1232
  %v1691 = vpop.permute.xlu0 %1690
  %1694 = vset.pattern.permute.xlu0 0
  %1695 = vperm.xlu0 %1694, %v1233
  %v1696 = vpop.permute.xlu0 %1695
  %1699 = vset.pattern.permute.xlu0 0
  %1700 = vperm.xlu0 %1699, %v1234
  %v1701 = vpop.permute.xlu0 %1700
  %1704 = vset.pattern.permute.xlu0 0
  %1705 = vperm.xlu0 %1704, %v1235
  %v1706 = vpop.permute.xlu0 %1705
  %1709 = vset.pattern.permute.xlu0 0
  %1710 = vperm.xlu0 %1709, %v1236
  %v1711 = vpop.permute.xlu0 %1710
  %1714 = vset.pattern.permute.xlu0 0
  %1715 = vperm.xlu0 %1714, %v1237
  %v1716 = vpop.permute.xlu0 %1715
  %1719 = vset.pattern.permute.xlu0 0
  %1720 = vperm.xlu0 %1719, %v1238
  %v1721 = vpop.permute.xlu0 %1720
  %1724 = vset.pattern.permute.xlu0 0
  %1725 = vperm.xlu0 %1724, %v1239
  %v1726 = vpop.permute.xlu0 %1725
  %1729 = vset.pattern.permute.xlu0 0
  %1730 = vperm.xlu0 %1729, %v1240
  %v1731 = vpop.permute.xlu0 %1730
  %1734 = vset.pattern.permute.xlu0 0
  %1735 = vperm.xlu0 %1734, %v1241
  %v1736 = vpop.permute.xlu0 %1735
  %1739 = vset.pattern.permute.xlu0 0
  %1740 = vperm.xlu0 %1739, %v1242
  %v1741 = vpop.permute.xlu0 %1740
  %1744 = vset.pattern.permute.xlu0 0
  %1745 = vperm.xlu0 %1744, %v1243
  %v1746 = vpop.permute.xlu0 %1745
  %1749 = vset.pattern.permute.xlu0 0
  %1750 = vperm.xlu0 %1749, %v1244
  %v1751 = vpop.permute.xlu0 %1750
  %1754 = vset.pattern.permute.xlu0 0
  %1755 = vperm.xlu0 %1754, %v1245
  %v1756 = vpop.permute.xlu0 %1755
  %1759 = vset.pattern.permute.xlu0 0
  %1760 = vperm.xlu0 %1759, %v1246
  %v1761 = vpop.permute.xlu0 %1760
  %1764 = vset.pattern.permute.xlu0 0
  %1765 = vperm.xlu0 %1764, %v1247
  %v1766 = vpop.permute.xlu0 %1765
  %1769 = vset.pattern.permute.xlu0 0
  %1770 = vperm.xlu0 %1769, %v1248
  %v1771 = vpop.permute.xlu0 %1770
  %1774 = vset.pattern.permute.xlu0 0
  %1775 = vperm.xlu0 %1774, %v1249
  %v1776 = vpop.permute.xlu0 %1775
  %1779 = vset.pattern.permute.xlu0 0
  %1780 = vperm.xlu0 %1779, %v1250
  %v1781 = vpop.permute.xlu0 %1780
  %1784 = vset.pattern.permute.xlu0 0
  %1785 = vperm.xlu0 %1784, %v1251
  %v1786 = vpop.permute.xlu0 %1785
  %1789 = vset.pattern.permute.xlu0 0
  %1790 = vperm.xlu0 %1789, %v1252
  %v1791 = vpop.permute.xlu0 %1790
  %1794 = vset.pattern.permute.xlu0 0
  %1795 = vperm.xlu0 %1794, %v1253
  %v1796 = vpop.permute.xlu0 %1795
  %1799 = vset.pattern.permute.xlu0 0
  %1800 = vperm.xlu0 %1799, %v1254
  %v1801 = vpop.permute.xlu0 %1800
  %1804 = vset.pattern.permute.xlu0 0
  %1805 = vperm.xlu0 %1804, %v1255
  %v1806 = vpop.permute.xlu0 %1805
  %1809 = vset.pattern.permute.xlu0 0
  %1810 = vperm.xlu0 %1809, %v1256
  %v1811 = vpop.permute.xlu0 %1810
  %1814 = vset.pattern.permute.xlu0 0
  %1815 = vperm.xlu0 %1814, %v1257
  %v1816 = vpop.permute.xlu0 %1815
  %1819 = vset.pattern.permute.xlu0 0
  %1820 = vperm.xlu0 %1819, %v1258
  %v1821 = vpop.permute.xlu0 %1820
  %1824 = vset.pattern.permute.xlu0 0
  %1825 = vperm.xlu0 %1824, %v1259
  %v1826 = vpop.permute.xlu0 %1825
  %1829 = vset.pattern.permute.xlu0 0
  %1830 = vperm.xlu0 %1829, %v1260
  %v1831 = vpop.permute.xlu0 %1830
  %1834 = vset.pattern.permute.xlu0 0
  %1835 = vperm.xlu0 %1834, %v1261
  %v1836 = vpop.permute.xlu0 %1835
  %1839 = vset.pattern.permute.xlu0 0
  %1840 = vperm.xlu0 %1839, %v1262
  %v1841 = vpop.permute.xlu0 %1840
  %1844 = vset.pattern.permute.xlu0 0
  %1845 = vperm.xlu0 %1844, %v1263
  %v1846 = vpop.permute.xlu0 %1845
  %1849 = vset.pattern.permute.xlu0 0
  %1850 = vperm.xlu0 %1849, %v1264
  %v1851 = vpop.permute.xlu0 %1850
  %1854 = vset.pattern.permute.xlu0 0
  %1855 = vperm.xlu0 %1854, %v1265
  %v1856 = vpop.permute.xlu0 %1855
  %1859 = vset.pattern.permute.xlu0 0
  %1860 = vperm.xlu0 %1859, %v1266
  %v1861 = vpop.permute.xlu0 %1860
  %1864 = vset.pattern.permute.xlu0 0
  %1865 = vperm.xlu0 %1864, %v1267
  %v1866 = vpop.permute.xlu0 %1865
  %1869 = vset.pattern.permute.xlu0 0
  %1870 = vperm.xlu0 %1869, %v1268
  %v1871 = vpop.permute.xlu0 %1870
  %1874 = vset.pattern.permute.xlu0 0
  %1875 = vperm.xlu0 %1874, %v1269
  %v1876 = vpop.permute.xlu0 %1875
  %1879 = vset.pattern.permute.xlu0 0
  %1880 = vperm.xlu0 %1879, %v1270
  %v1881 = vpop.permute.xlu0 %1880
  %1884 = vset.pattern.permute.xlu0 0
  %1885 = vperm.xlu0 %1884, %v1271
  %v1886 = vpop.permute.xlu0 %1885
  %1889 = vset.pattern.permute.xlu0 0
  %1890 = vperm.xlu0 %1889, %v1272
  %v1891 = vpop.permute.xlu0 %1890
  %1894 = vset.pattern.permute.xlu0 0
  %1895 = vperm.xlu0 %1894, %v1273
  %v1896 = vpop.permute.xlu0 %1895
  %1899 = vset.pattern.permute.xlu0 0
  %1900 = vperm.xlu0 %1899, %v1274
  %v1901 = vpop.permute.xlu0 %1900
  %1904 = vset.pattern.permute.xlu0 0
  %1905 = vperm.xlu0 %1904, %v1275
  %v1906 = vpop.permute.xlu0 %1905
  %1909 = vset.pattern.permute.xlu0 0
  %1910 = vperm.xlu0 %1909, %v1276
  %v1911 = vpop.permute.xlu0 %1910
  %1914 = vset.pattern.permute.xlu0 0
  %1915 = vperm.xlu0 %1914, %v1277
  %v1916 = vpop.permute.xlu0 %1915
  %1919 = vset.pattern.permute.xlu0 0
  %1920 = vperm.xlu0 %1919, %v1278
  %v1921 = vpop.permute.xlu0 %1920
  %1924 = vset.pattern.permute.xlu0 0
  %1925 = vperm.xlu0 %1924, %v1279
  %v1926 = vpop.permute.xlu0 %1925
  %1929 = vset.pattern.permute.xlu0 0
  %1930 = vperm.xlu0 %1929, %v1280
  %v1931 = vpop.permute.xlu0 %1930
  %1934 = vset.pattern.permute.xlu0 0
  %1935 = vperm.xlu0 %1934, %v1281
  %v1936 = vpop.permute.xlu0 %1935
  %1939 = vset.pattern.permute.xlu0 0
  %1940 = vperm.xlu0 %1939, %v1282
  %v1941 = vpop.permute.xlu0 %1940
  %1944 = vset.pattern.permute.xlu0 0
  %1945 = vperm.xlu0 %1944, %v1283
  %v1946 = vpop.permute.xlu0 %1945
  %1949 = vset.pattern.permute.xlu0 0
  %1950 = vperm.xlu0 %1949, %v1284
  %v1951 = vpop.permute.xlu0 %1950
  %1954 = vset.pattern.permute.xlu0 0
  %1955 = vperm.xlu0 %1954, %v1285
  %v1956 = vpop.permute.xlu0 %1955
  %1959 = vset.pattern.permute.xlu0 0
  %1960 = vperm.xlu0 %1959, %v1286
  %v1961 = vpop.permute.xlu0 %1960
  %1964 = vset.pattern.permute.xlu0 0
  %1965 = vperm.xlu0 %1964, %v1287
  %v1966 = vpop.permute.xlu0 %1965
  %1969 = vset.pattern.permute.xlu0 0
  %1970 = vperm.xlu0 %1969, %v1288
  %v1971 = vpop.permute.xlu0 %1970
  %1974 = vset.pattern.permute.xlu0 0
  %1975 = vperm.xlu0 %1974, %v1289
  %v1976 = vpop.permute.xlu0 %1975
  %1979 = vset.pattern.permute.xlu0 0
  %1980 = vperm.xlu0 %1979, %v1290
  %v1981 = vpop.permute.xlu0 %1980
  %1984 = vset.pattern.permute.xlu0 0
  %1985 = vperm.xlu0 %1984, %v1291
  %v1986 = vpop.permute.xlu0 %1985
  %1989 = vset.pattern.permute.xlu0 0
  %1990 = vperm.xlu0 %1989, %v1292
  %v1991 = vpop.permute.xlu0 %1990
  %1994 = vset.pattern.permute.xlu0 0
  %1995 = vperm.xlu0 %1994, %v1293
  %v1996 = vpop.permute.xlu0 %1995
  %v1998 = vmul.f32 %v12, %v1681
  %v1999 = vmul.f32 %v13, %v1681
  %v2000 = vmul.f32 %v14, %v1686
  %v2001 = vmul.f32 %v15, %v1686
  %v2002 = vmul.f32 %v16, %v1691
  %v2003 = vmul.f32 %v17, %v1691
  %v2004 = vmul.f32 %v18, %v1696
  %v2005 = vmul.f32 %v19, %v1696
  %v2006 = vmul.f32 %v20, %v1701
  %v2007 = vmul.f32 %v21, %v1701
  %v2008 = vmul.f32 %v22, %v1706
  %v2009 = vmul.f32 %v23, %v1706
  %v2010 = vmul.f32 %v24, %v1711
  %v2011 = vmul.f32 %v25, %v1711
  %v2012 = vmul.f32 %v26, %v1716
  %v2013 = vmul.f32 %v27, %v1716
  %v2014 = vmul.f32 %v28, %v1721
  %v2015 = vmul.f32 %v29, %v1721
  %v2016 = vmul.f32 %v30, %v1726
  %v2017 = vmul.f32 %v31, %v1726
  %v2018 = vmul.f32 %v32, %v1731
  %v2019 = vmul.f32 %v33, %v1731
  %v2020 = vmul.f32 %v34, %v1736
  %v2021 = vmul.f32 %v35, %v1736
  %v2022 = vmul.f32 %v36, %v1741
  %v2023 = vmul.f32 %v37, %v1741
  %v2024 = vmul.f32 %v38, %v1746
  %v2025 = vmul.f32 %v39, %v1746
  %v2026 = vmul.f32 %v40, %v1751
  %v2027 = vmul.f32 %v41, %v1751
  %v2028 = vmul.f32 %v42, %v1756
  %v2029 = vmul.f32 %v43, %v1756
  %v2030 = vmul.f32 %v44, %v1761
  %v2031 = vmul.f32 %v45, %v1761
  %v2032 = vmul.f32 %v46, %v1766
  %v2033 = vmul.f32 %v47, %v1766
  %v2034 = vmul.f32 %v48, %v1771
  %v2035 = vmul.f32 %v49, %v1771
  %v2036 = vmul.f32 %v50, %v1776
  %v2037 = vmul.f32 %v51, %v1776
  %v2038 = vmul.f32 %v52, %v1781
  %v2039 = vmul.f32 %v53, %v1781
  %v2040 = vmul.f32 %v54, %v1786
  %v2041 = vmul.f32 %v55, %v1786
  %v2042 = vmul.f32 %v56, %v1791
  %v2043 = vmul.f32 %v57, %v1791
  %v2044 = vmul.f32 %v58, %v1796
  %v2045 = vmul.f32 %v59, %v1796
  %v2046 = vmul.f32 %v60, %v1801
  %v2047 = vmul.f32 %v61, %v1801
  %v2048 = vmul.f32 %v62, %v1806
  %v2049 = vmul.f32 %v63, %v1806
  %v2050 = vmul.f32 %v64, %v1811
  %v2051 = vmul.f32 %v65, %v1811
  %v2052 = vmul.f32 %v66, %v1816
  %v2053 = vmul.f32 %v67, %v1816
  %v2054 = vmul.f32 %v68, %v1821
  %v2055 = vmul.f32 %v69, %v1821
  %v2056 = vmul.f32 %v70, %v1826
  %v2057 = vmul.f32 %v71, %v1826
  %v2058 = vmul.f32 %v72, %v1831
  %v2059 = vmul.f32 %v73, %v1831
  %v2060 = vmul.f32 %v74, %v1836
  %v2061 = vmul.f32 %v75, %v1836
  %v2062 = vmul.f32 %v76, %v1841
  %v2063 = vmul.f32 %v77, %v1841
  %v2064 = vmul.f32 %v78, %v1846
  %v2065 = vmul.f32 %v79, %v1846
  %v2066 = vmul.f32 %v80, %v1851
  %v2067 = vmul.f32 %v81, %v1851
  %v2068 = vmul.f32 %v82, %v1856
  %v2069 = vmul.f32 %v83, %v1856
  %v2070 = vmul.f32 %v84, %v1861
  %v2071 = vmul.f32 %v85, %v1861
  %v2072 = vmul.f32 %v86, %v1866
  %v2073 = vmul.f32 %v87, %v1866
  %v2074 = vmul.f32 %v88, %v1871
  %v2075 = vmul.f32 %v89, %v1871
  %v2076 = vmul.f32 %v90, %v1876
  %v2077 = vmul.f32 %v91, %v1876
  %v2078 = vmul.f32 %v92, %v1881
  %v2079 = vmul.f32 %v93, %v1881
  %v2080 = vmul.f32 %v94, %v1886
  %v2081 = vmul.f32 %v95, %v1886
  %v2082 = vmul.f32 %v96, %v1891
  %v2083 = vmul.f32 %v97, %v1891
  %v2084 = vmul.f32 %v98, %v1896
  %v2085 = vmul.f32 %v99, %v1896
  %v2086 = vmul.f32 %v100, %v1901
  %v2087 = vmul.f32 %v101, %v1901
  %v2088 = vmul.f32 %v102, %v1906
  %v2089 = vmul.f32 %v103, %v1906
  %v2090 = vmul.f32 %v104, %v1911
  %v2091 = vmul.f32 %v105, %v1911
  %v2092 = vmul.f32 %v106, %v1916
  %v2093 = vmul.f32 %v107, %v1916
  %v2094 = vmul.f32 %v108, %v1921
  %v2095 = vmul.f32 %v109, %v1921
  %v2096 = vmul.f32 %v110, %v1926
  %v2097 = vmul.f32 %v111, %v1926
  %v2098 = vmul.f32 %v112, %v1931
  %v2099 = vmul.f32 %v113, %v1931
  %v2100 = vmul.f32 %v114, %v1936
  %v2101 = vmul.f32 %v115, %v1936
  %v2102 = vmul.f32 %v116, %v1941
  %v2103 = vmul.f32 %v117, %v1941
  %v2104 = vmul.f32 %v118, %v1946
  %v2105 = vmul.f32 %v119, %v1946
  %v2106 = vmul.f32 %v120, %v1951
  %v2107 = vmul.f32 %v121, %v1951
  %v2108 = vmul.f32 %v122, %v1956
  %v2109 = vmul.f32 %v123, %v1956
  %v2110 = vmul.f32 %v124, %v1961
  %v2111 = vmul.f32 %v125, %v1961
  %v2112 = vmul.f32 %v126, %v1966
  %v2113 = vmul.f32 %v127, %v1966
  %v2114 = vmul.f32 %v128, %v1971
  %v2115 = vmul.f32 %v129, %v1971
  %v2116 = vmul.f32 %v130, %v1976
  %v2117 = vmul.f32 %v131, %v1976
  %v2118 = vmul.f32 %v132, %v1981
  %v2119 = vmul.f32 %v133, %v1981
  %v2120 = vmul.f32 %v134, %v1986
  %v2121 = vmul.f32 %v135, %v1986
  %v2122 = vmul.f32 %v136, %v1991
  %v2123 = vmul.f32 %v137, %v1991
  %v2124 = vmul.f32 %v138, %v1996
  %v2125 = vmul.f32 %v139, %v1996
  %2127 = vset.pattern.permute.xlu0 1
  %2128 = vperm.xlu0 %2127, %v1614
  %v2129 = vpop.permute.xlu0 %2128
  %2132 = vset.pattern.permute.xlu0 1
  %2133 = vperm.xlu0 %2132, %v1615
  %v2134 = vpop.permute.xlu0 %2133
  %2137 = vset.pattern.permute.xlu0 1
  %2138 = vperm.xlu0 %2137, %v1616
  %v2139 = vpop.permute.xlu0 %2138
  %2142 = vset.pattern.permute.xlu0 1
  %2143 = vperm.xlu0 %2142, %v1617
  %v2144 = vpop.permute.xlu0 %2143
  %2147 = vset.pattern.permute.xlu0 1
  %2148 = vperm.xlu0 %2147, %v1618
  %v2149 = vpop.permute.xlu0 %2148
  %2152 = vset.pattern.permute.xlu0 1
  %2153 = vperm.xlu0 %2152, %v1619
  %v2154 = vpop.permute.xlu0 %2153
  %2157 = vset.pattern.permute.xlu0 1
  %2158 = vperm.xlu0 %2157, %v1620
  %v2159 = vpop.permute.xlu0 %2158
  %2162 = vset.pattern.permute.xlu0 1
  %2163 = vperm.xlu0 %2162, %v1621
  %v2164 = vpop.permute.xlu0 %2163
  %2167 = vset.pattern.permute.xlu0 1
  %2168 = vperm.xlu0 %2167, %v1622
  %v2169 = vpop.permute.xlu0 %2168
  %2172 = vset.pattern.permute.xlu0 1
  %2173 = vperm.xlu0 %2172, %v1623
  %v2174 = vpop.permute.xlu0 %2173
  %2177 = vset.pattern.permute.xlu0 1
  %2178 = vperm.xlu0 %2177, %v1624
  %v2179 = vpop.permute.xlu0 %2178
  %2182 = vset.pattern.permute.xlu0 1
  %2183 = vperm.xlu0 %2182, %v1625
  %v2184 = vpop.permute.xlu0 %2183
  %2187 = vset.pattern.permute.xlu0 1
  %2188 = vperm.xlu0 %2187, %v1626
  %v2189 = vpop.permute.xlu0 %2188
  %2192 = vset.pattern.permute.xlu0 1
  %2193 = vperm.xlu0 %2192, %v1627
  %v2194 = vpop.permute.xlu0 %2193
  %2197 = vset.pattern.permute.xlu0 1
  %2198 = vperm.xlu0 %2197, %v1628
  %v2199 = vpop.permute.xlu0 %2198
  %2202 = vset.pattern.permute.xlu0 1
  %2203 = vperm.xlu0 %2202, %v1629
  %v2204 = vpop.permute.xlu0 %2203
  %2207 = vset.pattern.permute.xlu0 1
  %2208 = vperm.xlu0 %2207, %v1630
  %v2209 = vpop.permute.xlu0 %2208
  %2212 = vset.pattern.permute.xlu0 1
  %2213 = vperm.xlu0 %2212, %v1631
  %v2214 = vpop.permute.xlu0 %2213
  %2217 = vset.pattern.permute.xlu0 1
  %2218 = vperm.xlu0 %2217, %v1632
  %v2219 = vpop.permute.xlu0 %2218
  %2222 = vset.pattern.permute.xlu0 1
  %2223 = vperm.xlu0 %2222, %v1633
  %v2224 = vpop.permute.xlu0 %2223
  %2227 = vset.pattern.permute.xlu0 1
  %2228 = vperm.xlu0 %2227, %v1634
  %v2229 = vpop.permute.xlu0 %2228
  %2232 = vset.pattern.permute.xlu0 1
  %2233 = vperm.xlu0 %2232, %v1635
  %v2234 = vpop.permute.xlu0 %2233
  %2237 = vset.pattern.permute.xlu0 1
  %2238 = vperm.xlu0 %2237, %v1636
  %v2239 = vpop.permute.xlu0 %2238
  %2242 = vset.pattern.permute.xlu0 1
  %2243 = vperm.xlu0 %2242, %v1637
  %v2244 = vpop.permute.xlu0 %2243
  %2247 = vset.pattern.permute.xlu0 1
  %2248 = vperm.xlu0 %2247, %v1638
  %v2249 = vpop.permute.xlu0 %2248
  %2252 = vset.pattern.permute.xlu0 1
  %2253 = vperm.xlu0 %2252, %v1639
  %v2254 = vpop.permute.xlu0 %2253
  %2257 = vset.pattern.permute.xlu0 1
  %2258 = vperm.xlu0 %2257, %v1640
  %v2259 = vpop.permute.xlu0 %2258
  %2262 = vset.pattern.permute.xlu0 1
  %2263 = vperm.xlu0 %2262, %v1641
  %v2264 = vpop.permute.xlu0 %2263
  %2267 = vset.pattern.permute.xlu0 1
  %2268 = vperm.xlu0 %2267, %v1642
  %v2269 = vpop.permute.xlu0 %2268
  %2272 = vset.pattern.permute.xlu0 1
  %2273 = vperm.xlu0 %2272, %v1643
  %v2274 = vpop.permute.xlu0 %2273
  %2277 = vset.pattern.permute.xlu0 1
  %2278 = vperm.xlu0 %2277, %v1644
  %v2279 = vpop.permute.xlu0 %2278
  %2282 = vset.pattern.permute.xlu0 1
  %2283 = vperm.xlu0 %2282, %v1645
  %v2284 = vpop.permute.xlu0 %2283
  %2287 = vset.pattern.permute.xlu0 1
  %2288 = vperm.xlu0 %2287, %v1646
  %v2289 = vpop.permute.xlu0 %2288
  %2292 = vset.pattern.permute.xlu0 1
  %2293 = vperm.xlu0 %2292, %v1647
  %v2294 = vpop.permute.xlu0 %2293
  %2297 = vset.pattern.permute.xlu0 1
  %2298 = vperm.xlu0 %2297, %v1648
  %v2299 = vpop.permute.xlu0 %2298
  %2302 = vset.pattern.permute.xlu0 1
  %2303 = vperm.xlu0 %2302, %v1649
  %v2304 = vpop.permute.xlu0 %2303
  %2307 = vset.pattern.permute.xlu0 1
  %2308 = vperm.xlu0 %2307, %v1650
  %v2309 = vpop.permute.xlu0 %2308
  %2312 = vset.pattern.permute.xlu0 1
  %2313 = vperm.xlu0 %2312, %v1651
  %v2314 = vpop.permute.xlu0 %2313
  %2317 = vset.pattern.permute.xlu0 1
  %2318 = vperm.xlu0 %2317, %v1652
  %v2319 = vpop.permute.xlu0 %2318
  %2322 = vset.pattern.permute.xlu0 1
  %2323 = vperm.xlu0 %2322, %v1653
  %v2324 = vpop.permute.xlu0 %2323
  %2327 = vset.pattern.permute.xlu0 1
  %2328 = vperm.xlu0 %2327, %v1654
  %v2329 = vpop.permute.xlu0 %2328
  %2332 = vset.pattern.permute.xlu0 1
  %2333 = vperm.xlu0 %2332, %v1655
  %v2334 = vpop.permute.xlu0 %2333
  %2337 = vset.pattern.permute.xlu0 1
  %2338 = vperm.xlu0 %2337, %v1656
  %v2339 = vpop.permute.xlu0 %2338
  %2342 = vset.pattern.permute.xlu0 1
  %2343 = vperm.xlu0 %2342, %v1657
  %v2344 = vpop.permute.xlu0 %2343
  %2347 = vset.pattern.permute.xlu0 1
  %2348 = vperm.xlu0 %2347, %v1658
  %v2349 = vpop.permute.xlu0 %2348
  %2352 = vset.pattern.permute.xlu0 1
  %2353 = vperm.xlu0 %2352, %v1659
  %v2354 = vpop.permute.xlu0 %2353
  %2357 = vset.pattern.permute.xlu0 1
  %2358 = vperm.xlu0 %2357, %v1660
  %v2359 = vpop.permute.xlu0 %2358
  %2362 = vset.pattern.permute.xlu0 1
  %2363 = vperm.xlu0 %2362, %v1661
  %v2364 = vpop.permute.xlu0 %2363
  %2367 = vset.pattern.permute.xlu0 1
  %2368 = vperm.xlu0 %2367, %v1662
  %v2369 = vpop.permute.xlu0 %2368
  %2372 = vset.pattern.permute.xlu0 1
  %2373 = vperm.xlu0 %2372, %v1663
  %v2374 = vpop.permute.xlu0 %2373
  %2377 = vset.pattern.permute.xlu0 1
  %2378 = vperm.xlu0 %2377, %v1664
  %v2379 = vpop.permute.xlu0 %2378
  %2382 = vset.pattern.permute.xlu0 1
  %2383 = vperm.xlu0 %2382, %v1665
  %v2384 = vpop.permute.xlu0 %2383
  %2387 = vset.pattern.permute.xlu0 1
  %2388 = vperm.xlu0 %2387, %v1666
  %v2389 = vpop.permute.xlu0 %2388
  %2392 = vset.pattern.permute.xlu0 1
  %2393 = vperm.xlu0 %2392, %v1667
  %v2394 = vpop.permute.xlu0 %2393
  %2397 = vset.pattern.permute.xlu0 1
  %2398 = vperm.xlu0 %2397, %v1668
  %v2399 = vpop.permute.xlu0 %2398
  %2402 = vset.pattern.permute.xlu0 1
  %2403 = vperm.xlu0 %2402, %v1669
  %v2404 = vpop.permute.xlu0 %2403
  %2407 = vset.pattern.permute.xlu0 1
  %2408 = vperm.xlu0 %2407, %v1670
  %v2409 = vpop.permute.xlu0 %2408
  %2412 = vset.pattern.permute.xlu0 1
  %2413 = vperm.xlu0 %2412, %v1671
  %v2414 = vpop.permute.xlu0 %2413
  %2417 = vset.pattern.permute.xlu0 1
  %2418 = vperm.xlu0 %2417, %v1672
  %v2419 = vpop.permute.xlu0 %2418
  %2422 = vset.pattern.permute.xlu0 1
  %2423 = vperm.xlu0 %2422, %v1673
  %v2424 = vpop.permute.xlu0 %2423
  %2427 = vset.pattern.permute.xlu0 1
  %2428 = vperm.xlu0 %2427, %v1674
  %v2429 = vpop.permute.xlu0 %2428
  %2432 = vset.pattern.permute.xlu0 1
  %2433 = vperm.xlu0 %2432, %v1675
  %v2434 = vpop.permute.xlu0 %2433
  %2437 = vset.pattern.permute.xlu0 1
  %2438 = vperm.xlu0 %2437, %v1676
  %v2439 = vpop.permute.xlu0 %2438
  %2442 = vset.pattern.permute.xlu0 1
  %2443 = vperm.xlu0 %2442, %v1677
  %v2444 = vpop.permute.xlu0 %2443
  %v2446 = vadd.f32 %v1998, %v2129
  %v2447 = vadd.f32 %v1999, %v2129
  %v2448 = vadd.f32 %v2000, %v2134
  %v2449 = vadd.f32 %v2001, %v2134
  %v2450 = vadd.f32 %v2002, %v2139
  %v2451 = vadd.f32 %v2003, %v2139
  %v2452 = vadd.f32 %v2004, %v2144
  %v2453 = vadd.f32 %v2005, %v2144
  %v2454 = vadd.f32 %v2006, %v2149
  %v2455 = vadd.f32 %v2007, %v2149
  %v2456 = vadd.f32 %v2008, %v2154
  %v2457 = vadd.f32 %v2009, %v2154
  %v2458 = vadd.f32 %v2010, %v2159
  %v2459 = vadd.f32 %v2011, %v2159
  %v2460 = vadd.f32 %v2012, %v2164
  %v2461 = vadd.f32 %v2013, %v2164
  %v2462 = vadd.f32 %v2014, %v2169
  %v2463 = vadd.f32 %v2015, %v2169
  %v2464 = vadd.f32 %v2016, %v2174
  %v2465 = vadd.f32 %v2017, %v2174
  %v2466 = vadd.f32 %v2018, %v2179
  %v2467 = vadd.f32 %v2019, %v2179
  %v2468 = vadd.f32 %v2020, %v2184
  %v2469 = vadd.f32 %v2021, %v2184
  %v2470 = vadd.f32 %v2022, %v2189
  %v2471 = vadd.f32 %v2023, %v2189
  %v2472 = vadd.f32 %v2024, %v2194
  %v2473 = vadd.f32 %v2025, %v2194
  %v2474 = vadd.f32 %v2026, %v2199
  %v2475 = vadd.f32 %v2027, %v2199
  %v2476 = vadd.f32 %v2028, %v2204
  %v2477 = vadd.f32 %v2029, %v2204
  %v2478 = vadd.f32 %v2030, %v2209
  %v2479 = vadd.f32 %v2031, %v2209
  %v2480 = vadd.f32 %v2032, %v2214
  %v2481 = vadd.f32 %v2033, %v2214
  %v2482 = vadd.f32 %v2034, %v2219
  %v2483 = vadd.f32 %v2035, %v2219
  %v2484 = vadd.f32 %v2036, %v2224
  %v2485 = vadd.f32 %v2037, %v2224
  %v2486 = vadd.f32 %v2038, %v2229
  %v2487 = vadd.f32 %v2039, %v2229
  %v2488 = vadd.f32 %v2040, %v2234
  %v2489 = vadd.f32 %v2041, %v2234
  %v2490 = vadd.f32 %v2042, %v2239
  %v2491 = vadd.f32 %v2043, %v2239
  %v2492 = vadd.f32 %v2044, %v2244
  %v2493 = vadd.f32 %v2045, %v2244
  %v2494 = vadd.f32 %v2046, %v2249
  %v2495 = vadd.f32 %v2047, %v2249
  %v2496 = vadd.f32 %v2048, %v2254
  %v2497 = vadd.f32 %v2049, %v2254
  %v2498 = vadd.f32 %v2050, %v2259
  %v2499 = vadd.f32 %v2051, %v2259
  %v2500 = vadd.f32 %v2052, %v2264
  %v2501 = vadd.f32 %v2053, %v2264
  %v2502 = vadd.f32 %v2054, %v2269
  %v2503 = vadd.f32 %v2055, %v2269
  %v2504 = vadd.f32 %v2056, %v2274
  %v2505 = vadd.f32 %v2057, %v2274
  %v2506 = vadd.f32 %v2058, %v2279
  %v2507 = vadd.f32 %v2059, %v2279
  %v2508 = vadd.f32 %v2060, %v2284
  %v2509 = vadd.f32 %v2061, %v2284
  %v2510 = vadd.f32 %v2062, %v2289
  %v2511 = vadd.f32 %v2063, %v2289
  %v2512 = vadd.f32 %v2064, %v2294
  %v2513 = vadd.f32 %v2065, %v2294
  %v2514 = vadd.f32 %v2066, %v2299
  %v2515 = vadd.f32 %v2067, %v2299
  %v2516 = vadd.f32 %v2068, %v2304
  %v2517 = vadd.f32 %v2069, %v2304
  %v2518 = vadd.f32 %v2070, %v2309
  %v2519 = vadd.f32 %v2071, %v2309
  %v2520 = vadd.f32 %v2072, %v2314
  %v2521 = vadd.f32 %v2073, %v2314
  %v2522 = vadd.f32 %v2074, %v2319
  %v2523 = vadd.f32 %v2075, %v2319
  %v2524 = vadd.f32 %v2076, %v2324
  %v2525 = vadd.f32 %v2077, %v2324
  %v2526 = vadd.f32 %v2078, %v2329
  %v2527 = vadd.f32 %v2079, %v2329
  %v2528 = vadd.f32 %v2080, %v2334
  %v2529 = vadd.f32 %v2081, %v2334
  %v2530 = vadd.f32 %v2082, %v2339
  %v2531 = vadd.f32 %v2083, %v2339
  %v2532 = vadd.f32 %v2084, %v2344
  %v2533 = vadd.f32 %v2085, %v2344
  %v2534 = vadd.f32 %v2086, %v2349
  %v2535 = vadd.f32 %v2087, %v2349
  %v2536 = vadd.f32 %v2088, %v2354
  %v2537 = vadd.f32 %v2089, %v2354
  %v2538 = vadd.f32 %v2090, %v2359
  %v2539 = vadd.f32 %v2091, %v2359
  %v2540 = vadd.f32 %v2092, %v2364
  %v2541 = vadd.f32 %v2093, %v2364
  %v2542 = vadd.f32 %v2094, %v2369
  %v2543 = vadd.f32 %v2095, %v2369
  %v2544 = vadd.f32 %v2096, %v2374
  %v2545 = vadd.f32 %v2097, %v2374
  %v2546 = vadd.f32 %v2098, %v2379
  %v2547 = vadd.f32 %v2099, %v2379
  %v2548 = vadd.f32 %v2100, %v2384
  %v2549 = vadd.f32 %v2101, %v2384
  %v2550 = vadd.f32 %v2102, %v2389
  %v2551 = vadd.f32 %v2103, %v2389
  %v2552 = vadd.f32 %v2104, %v2394
  %v2553 = vadd.f32 %v2105, %v2394
  %v2554 = vadd.f32 %v2106, %v2399
  %v2555 = vadd.f32 %v2107, %v2399
  %v2556 = vadd.f32 %v2108, %v2404
  %v2557 = vadd.f32 %v2109, %v2404
  %v2558 = vadd.f32 %v2110, %v2409
  %v2559 = vadd.f32 %v2111, %v2409
  %v2560 = vadd.f32 %v2112, %v2414
  %v2561 = vadd.f32 %v2113, %v2414
  %v2562 = vadd.f32 %v2114, %v2419
  %v2563 = vadd.f32 %v2115, %v2419
  %v2564 = vadd.f32 %v2116, %v2424
  %v2565 = vadd.f32 %v2117, %v2424
  %v2566 = vadd.f32 %v2118, %v2429
  %v2567 = vadd.f32 %v2119, %v2429
  %v2568 = vadd.f32 %v2120, %v2434
  %v2569 = vadd.f32 %v2121, %v2434
  %v2570 = vadd.f32 %v2122, %v2439
  %v2571 = vadd.f32 %v2123, %v2439
  %v2572 = vadd.f32 %v2124, %v2444
  %v2573 = vadd.f32 %v2125, %v2444
  %v2574 = vmax.f32 %v2446, 0.0
  %v2575 = vmax.f32 %v2447, 0.0
  %v2576 = vmax.f32 %v2448, 0.0
  %v2577 = vmax.f32 %v2449, 0.0
  %v2578 = vmax.f32 %v2450, 0.0
  %v2579 = vmax.f32 %v2451, 0.0
  %v2580 = vmax.f32 %v2452, 0.0
  %v2581 = vmax.f32 %v2453, 0.0
  %v2582 = vmax.f32 %v2454, 0.0
  %v2583 = vmax.f32 %v2455, 0.0
  %v2584 = vmax.f32 %v2456, 0.0
  %v2585 = vmax.f32 %v2457, 0.0
  %v2586 = vmax.f32 %v2458, 0.0
  %v2587 = vmax.f32 %v2459, 0.0
  %v2588 = vmax.f32 %v2460, 0.0
  %v2589 = vmax.f32 %v2461, 0.0
  %v2590 = vmax.f32 %v2462, 0.0
  %v2591 = vmax.f32 %v2463, 0.0
  %v2592 = vmax.f32 %v2464, 0.0
  %v2593 = vmax.f32 %v2465, 0.0
  %v2594 = vmax.f32 %v2466, 0.0
  %v2595 = vmax.f32 %v2467, 0.0
  %v2596 = vmax.f32 %v2468, 0.0
  %v2597 = vmax.f32 %v2469, 0.0
  %v2598 = vmax.f32 %v2470, 0.0
  %v2599 = vmax.f32 %v2471, 0.0
  %v2600 = vmax.f32 %v2472, 0.0
  %v2601 = vmax.f32 %v2473, 0.0
  %v2602 = vmax.f32 %v2474, 0.0
  %v2603 = vmax.f32 %v2475, 0.0
  %v2604 = vmax.f32 %v2476, 0.0
  %v2605 = vmax.f32 %v2477, 0.0
  %v2606 = vmax.f32 %v2478, 0.0
  %v2607 = vmax.f32 %v2479, 0.0
  %v2608 = vmax.f32 %v2480, 0.0
  %v2609 = vmax.f32 %v2481, 0.0
  %v2610 = vmax.f32 %v2482, 0.0
  %v2611 = vmax.f32 %v2483, 0.0
  %v2612 = vmax.f32 %v2484, 0.0
  %v2613 = vmax.f32 %v2485, 0.0
  %v2614 = vmax.f32 %v2486, 0.0
  %v2615 = vmax.f32 %v2487, 0.0
  %v2616 = vmax.f32 %v2488, 0.0
  %v2617 = vmax.f32 %v2489, 0.0
  %v2618 = vmax.f32 %v2490, 0.0
  %v2619 = vmax.f32 %v2491, 0.0
  %v2620 = vmax.f32 %v2492, 0.0
  %v2621 = vmax.f32 %v2493, 0.0
  %v2622 = vmax.f32 %v2494, 0.0
  %v2623 = vmax.f32 %v2495, 0.0
  %v2624 = vmax.f32 %v2496, 0.0
  %v2625 = vmax.f32 %v2497, 0.0
  %v2626 = vmax.f32 %v2498, 0.0
  %v2627 = vmax.f32 %v2499, 0.0
  %v2628 = vmax.f32 %v2500, 0.0
  %v2629 = vmax.f32 %v2501, 0.0
  %v2630 = vmax.f32 %v2502, 0.0
  %v2631 = vmax.f32 %v2503, 0.0
  %v2632 = vmax.f32 %v2504, 0.0
  %v2633 = vmax.f32 %v2505, 0.0
  %v2634 = vmax.f32 %v2506, 0.0
  %v2635 = vmax.f32 %v2507, 0.0
  %v2636 = vmax.f32 %v2508, 0.0
  %v2637 = vmax.f32 %v2509, 0.0
  %v2638 = vmax.f32 %v2510, 0.0
  %v2639 = vmax.f32 %v2511, 0.0
  %v2640 = vmax.f32 %v2512, 0.0
  %v2641 = vmax.f32 %v2513, 0.0
  %v2642 = vmax.f32 %v2514, 0.0
  %v2643 = vmax.f32 %v2515, 0.0
  %v2644 = vmax.f32 %v2516, 0.0
  %v2645 = vmax.f32 %v2517, 0.0
  %v2646 = vmax.f32 %v2518, 0.0
  %v2647 = vmax.f32 %v2519, 0.0
  %v2648 = vmax.f32 %v2520, 0.0
  %v2649 = vmax.f32 %v2521, 0.0
  %v2650 = vmax.f32 %v2522, 0.0
  %v2651 = vmax.f32 %v2523, 0.0
  %v2652 = vmax.f32 %v2524, 0.0
  %v2653 = vmax.f32 %v2525, 0.0
  %v2654 = vmax.f32 %v2526, 0.0
  %v2655 = vmax.f32 %v2527, 0.0
  %v2656 = vmax.f32 %v2528, 0.0
  %v2657 = vmax.f32 %v2529, 0.0
  %v2658 = vmax.f32 %v2530, 0.0
  %v2659 = vmax.f32 %v2531, 0.0
  %v2660 = vmax.f32 %v2532, 0.0
  %v2661 = vmax.f32 %v2533, 0.0
  %v2662 = vmax.f32 %v2534, 0.0
  %v2663 = vmax.f32 %v2535, 0.0
  %v2664 = vmax.f32 %v2536, 0.0
  %v2665 = vmax.f32 %v2537, 0.0
  %v2666 = vmax.f32 %v2538, 0.0
  %v2667 = vmax.f32 %v2539, 0.0
  %v2668 = vmax.f32 %v2540, 0.0
  %v2669 = vmax.f32 %v2541, 0.0
  %v2670 = vmax.f32 %v2542, 0.0
  %v2671 = vmax.f32 %v2543, 0.0
  %v2672 = vmax.f32 %v2544, 0.0
  %v2673 = vmax.f32 %v2545, 0.0
  %v2674 = vmax.f32 %v2546, 0.0
  %v2675 = vmax.f32 %v2547, 0.0
  %v2676 = vmax.f32 %v2548, 0.0
  %v2677 = vmax.f32 %v2549, 0.0
  %v2678 = vmax.f32 %v2550, 0.0
  %v2679 = vmax.f32 %v2551, 0.0
  %v2680 = vmax.f32 %v2552, 0.0
  %v2681 = vmax.f32 %v2553, 0.0
  %v2682 = vmax.f32 %v2554, 0.0
  %v2683 = vmax.f32 %v2555, 0.0
  %v2684 = vmax.f32 %v2556, 0.0
  %v2685 = vmax.f32 %v2557, 0.0
  %v2686 = vmax.f32 %v2558, 0.0
  %v2687 = vmax.f32 %v2559, 0.0
  %v2688 = vmax.f32 %v2560, 0.0
  %v2689 = vmax.f32 %v2561, 0.0
  %v2690 = vmax.f32 %v2562, 0.0
  %v2691 = vmax.f32 %v2563, 0.0
  %v2692 = vmax.f32 %v2564, 0.0
  %v2693 = vmax.f32 %v2565, 0.0
  %v2694 = vmax.f32 %v2566, 0.0
  %v2695 = vmax.f32 %v2567, 0.0
  %v2696 = vmax.f32 %v2568, 0.0
  %v2697 = vmax.f32 %v2569, 0.0
  %v2698 = vmax.f32 %v2570, 0.0
  %v2699 = vmax.f32 %v2571, 0.0
  %v2700 = vmax.f32 %v2572, 0.0
  %v2701 = vmax.f32 %v2573, 0.0
  %2702 = vst [vmem:[%s2] sm:$0xff] %v2574
  %2703 = vst.msk [vmem:[%s2 + $0x8] sm:$0xff] %vm140, %v2575
  %2704 = vst [vmem:[%s2 + $0x10] sm:$0xff] %v2576
  %2705 = vst.msk [vmem:[%s2 + $0x18] sm:$0xff] %vm140, %v2577
  %2706 = vst [vmem:[%s2 + $0x20] sm:$0xff] %v2578
  %2707 = vst.msk [vmem:[%s2 + $0x28] sm:$0xff] %vm140, %v2579
  %2708 = vst [vmem:[%s2 + $0x30] sm:$0xff] %v2580
  %2709 = vst.msk [vmem:[%s2 + $0x38] sm:$0xff] %vm140, %v2581
  %2710 = vst [vmem:[%s2 + $0x40] sm:$0xff] %v2582
  %2711 = vst.msk [vmem:[%s2 + $0x48] sm:$0xff] %vm140, %v2583
  %2712 = vst [vmem:[%s2 + $0x50] sm:$0xff] %v2584
  %2713 = vst.msk [vmem:[%s2 + $0x58] sm:$0xff] %vm140, %v2585
  %2714 = vst [vmem:[%s2 + $0x60] sm:$0xff] %v2586
  %2715 = vst.msk [vmem:[%s2 + $0x68] sm:$0xff] %vm140, %v2587
  %2716 = vst [vmem:[%s2 + $0x70] sm:$0xff] %v2588
  %2717 = vst.msk [vmem:[%s2 + $0x78] sm:$0xff] %vm140, %v2589
  %2718 = vst [vmem:[%s2 + $0x80] sm:$0xff] %v2590
  %2719 = vst.msk [vmem:[%s2 + $0x88] sm:$0xff] %vm140, %v2591
  %2720 = vst [vmem:[%s2 + $0x90] sm:$0xff] %v2592
  %2721 = vst.msk [vmem:[%s2 + $0x98] sm:$0xff] %vm140, %v2593
  %2722 = vst [vmem:[%s2 + $0xa0] sm:$0xff] %v2594
  %2723 = vst.msk [vmem:[%s2 + $0xa8] sm:$0xff] %vm140, %v2595
  %2724 = vst [vmem:[%s2 + $0xb0] sm:$0xff] %v2596
  %2725 = vst.msk [vmem:[%s2 + $0xb8] sm:$0xff] %vm140, %v2597
  %2726 = vst [vmem:[%s2 + $0xc0] sm:$0xff] %v2598
  %2727 = vst.msk [vmem:[%s2 + $0xc8] sm:$0xff] %vm140, %v2599
  %2728 = vst [vmem:[%s2 + $0xd0] sm:$0xff] %v2600
  %2729 = vst.msk [vmem:[%s2 + $0xd8] sm:$0xff] %vm140, %v2601
  %2730 = vst [vmem:[%s2 + $0xe0] sm:$0xff] %v2602
  %2731 = vst.msk [vmem:[%s2 + $0xe8] sm:$0xff] %vm140, %v2603
  %2732 = vst [vmem:[%s2 + $0xf0] sm:$0xff] %v2604
  %2733 = vst.msk [vmem:[%s2 + $0xf8] sm:$0xff] %vm140, %v2605
  %2734 = vst [vmem:[%s2 + $0x100] sm:$0xff] %v2606
  %2735 = vst.msk [vmem:[%s2 + $0x108] sm:$0xff] %vm140, %v2607
  %2736 = vst [vmem:[%s2 + $0x110] sm:$0xff] %v2608
  %2737 = vst.msk [vmem:[%s2 + $0x118] sm:$0xff] %vm140, %v2609
  %2738 = vst [vmem:[%s2 + $0x120] sm:$0xff] %v2610
  %2739 = vst.msk [vmem:[%s2 + $0x128] sm:$0xff] %vm140, %v2611
  %2740 = vst [vmem:[%s2 + $0x130] sm:$0xff] %v2612
  %2741 = vst.msk [vmem:[%s2 + $0x138] sm:$0xff] %vm140, %v2613
  %2742 = vst [vmem:[%s2 + $0x140] sm:$0xff] %v2614
  %2743 = vst.msk [vmem:[%s2 + $0x148] sm:$0xff] %vm140, %v2615
  %2744 = vst [vmem:[%s2 + $0x150] sm:$0xff] %v2616
  %2745 = vst.msk [vmem:[%s2 + $0x158] sm:$0xff] %vm140, %v2617
  %2746 = vst [vmem:[%s2 + $0x160] sm:$0xff] %v2618
  %2747 = vst.msk [vmem:[%s2 + $0x168] sm:$0xff] %vm140, %v2619
  %2748 = vst [vmem:[%s2 + $0x170] sm:$0xff] %v2620
  %2749 = vst.msk [vmem:[%s2 + $0x178] sm:$0xff] %vm140, %v2621
  %2750 = vst [vmem:[%s2 + $0x180] sm:$0xff] %v2622
  %2751 = vst.msk [vmem:[%s2 + $0x188] sm:$0xff] %vm140, %v2623
  %2752 = vst [vmem:[%s2 + $0x190] sm:$0xff] %v2624
  %2753 = vst.msk [vmem:[%s2 + $0x198] sm:$0xff] %vm140, %v2625
  %2754 = vst [vmem:[%s2 + $0x1a0] sm:$0xff] %v2626
  %2755 = vst.msk [vmem:[%s2 + $0x1a8] sm:$0xff] %vm140, %v2627
  %2756 = vst [vmem:[%s2 + $0x1b0] sm:$0xff] %v2628
  %2757 = vst.msk [vmem:[%s2 + $0x1b8] sm:$0xff] %vm140, %v2629
  %2758 = vst [vmem:[%s2 + $0x1c0] sm:$0xff] %v2630
  %2759 = vst.msk [vmem:[%s2 + $0x1c8] sm:$0xff] %vm140, %v2631
  %2760 = vst [vmem:[%s2 + $0x1d0] sm:$0xff] %v2632
  %2761 = vst.msk [vmem:[%s2 + $0x1d8] sm:$0xff] %vm140, %v2633
  %2762 = vst [vmem:[%s2 + $0x1e0] sm:$0xff] %v2634
  %2763 = vst.msk [vmem:[%s2 + $0x1e8] sm:$0xff] %vm140, %v2635
  %2764 = vst [vmem:[%s2 + $0x1f0] sm:$0xff] %v2636
  %2765 = vst.msk [vmem:[%s2 + $0x1f8] sm:$0xff] %vm140, %v2637
  %2766 = vst [vmem:[%s2 + $0x200] sm:$0xff] %v2638
  %2767 = vst.msk [vmem:[%s2 + $0x208] sm:$0xff] %vm140, %v2639
  %2768 = vst [vmem:[%s2 + $0x210] sm:$0xff] %v2640
  %2769 = vst.msk [vmem:[%s2 + $0x218] sm:$0xff] %vm140, %v2641
  %2770 = vst [vmem:[%s2 + $0x220] sm:$0xff] %v2642
  %2771 = vst.msk [vmem:[%s2 + $0x228] sm:$0xff] %vm140, %v2643
  %2772 = vst [vmem:[%s2 + $0x230] sm:$0xff] %v2644
  %2773 = vst.msk [vmem:[%s2 + $0x238] sm:$0xff] %vm140, %v2645
  %2774 = vst [vmem:[%s2 + $0x240] sm:$0xff] %v2646
  %2775 = vst.msk [vmem:[%s2 + $0x248] sm:$0xff] %vm140, %v2647
  %2776 = vst [vmem:[%s2 + $0x250] sm:$0xff] %v2648
  %2777 = vst.msk [vmem:[%s2 + $0x258] sm:$0xff] %vm140, %v2649
  %2778 = vst [vmem:[%s2 + $0x260] sm:$0xff] %v2650
  %2779 = vst.msk [vmem:[%s2 + $0x268] sm:$0xff] %vm140, %v2651
  %2780 = vst [vmem:[%s2 + $0x270] sm:$0xff] %v2652
  %2781 = vst.msk [vmem:[%s2 + $0x278] sm:$0xff] %vm140, %v2653
  %2782 = vst [vmem:[%s2 + $0x280] sm:$0xff] %v2654
  %2783 = vst.msk [vmem:[%s2 + $0x288] sm:$0xff] %vm140, %v2655
  %2784 = vst [vmem:[%s2 + $0x290] sm:$0xff] %v2656
  %2785 = vst.msk [vmem:[%s2 + $0x298] sm:$0xff] %vm140, %v2657
  %2786 = vst [vmem:[%s2 + $0x2a0] sm:$0xff] %v2658
  %2787 = vst.msk [vmem:[%s2 + $0x2a8] sm:$0xff] %vm140, %v2659
  %2788 = vst [vmem:[%s2 + $0x2b0] sm:$0xff] %v2660
  %2789 = vst.msk [vmem:[%s2 + $0x2b8] sm:$0xff] %vm140, %v2661
  %2790 = vst [vmem:[%s2 + $0x2c0] sm:$0xff] %v2662
  %2791 = vst.msk [vmem:[%s2 + $0x2c8] sm:$0xff] %vm140, %v2663
  %2792 = vst [vmem:[%s2 + $0x2d0] sm:$0xff] %v2664
  %2793 = vst.msk [vmem:[%s2 + $0x2d8] sm:$0xff] %vm140, %v2665
  %2794 = vst [vmem:[%s2 + $0x2e0] sm:$0xff] %v2666
  %2795 = vst.msk [vmem:[%s2 + $0x2e8] sm:$0xff] %vm140, %v2667
  %2796 = vst [vmem:[%s2 + $0x2f0] sm:$0xff] %v2668
  %2797 = vst.msk [vmem:[%s2 + $0x2f8] sm:$0xff] %vm140, %v2669
  %2798 = vst [vmem:[%s2 + $0x300] sm:$0xff] %v2670
  %2799 = vst.msk [vmem:[%s2 + $0x308] sm:$0xff] %vm140, %v2671
  %2800 = vst [vmem:[%s2 + $0x310] sm:$0xff] %v2672
  %2801 = vst.msk [vmem:[%s2 + $0x318] sm:$0xff] %vm140, %v2673
  %2802 = vst [vmem:[%s2 + $0x320] sm:$0xff] %v2674
  %2803 = vst.msk [vmem:[%s2 + $0x328] sm:$0xff] %vm140, %v2675
  %2804 = vst [vmem:[%s2 + $0x330] sm:$0xff] %v2676
  %2805 = vst.msk [vmem:[%s2 + $0x338] sm:$0xff] %vm140, %v2677
  %2806 = vst [vmem:[%s2 + $0x340] sm:$0xff] %v2678
  %2807 = vst.msk [vmem:[%s2 + $0x348] sm:$0xff] %vm140, %v2679
  %2808 = vst [vmem:[%s2 + $0x350] sm:$0xff] %v2680
  %2809 = vst.msk [vmem:[%s2 + $0x358] sm:$0xff] %vm140, %v2681
  %2810 = vst [vmem:[%s2 + $0x360] sm:$0xff] %v2682
  %2811 = vst.msk [vmem:[%s2 + $0x368] sm:$0xff] %vm140, %v2683
  %2812 = vst [vmem:[%s2 + $0x370] sm:$0xff] %v2684
  %2813 = vst.msk [vmem:[%s2 + $0x378] sm:$0xff] %vm140, %v2685
  %2814 = vst [vmem:[%s2 + $0x380] sm:$0xff] %v2686
  %2815 = vst.msk [vmem:[%s2 + $0x388] sm:$0xff] %vm140, %v2687
  %2816 = vst [vmem:[%s2 + $0x390] sm:$0xff] %v2688
  %2817 = vst.msk [vmem:[%s2 + $0x398] sm:$0xff] %vm140, %v2689
  %2818 = vst [vmem:[%s2 + $0x3a0] sm:$0xff] %v2690
  %2819 = vst.msk [vmem:[%s2 + $0x3a8] sm:$0xff] %vm140, %v2691
  %2820 = vst [vmem:[%s2 + $0x3b0] sm:$0xff] %v2692
  %2821 = vst.msk [vmem:[%s2 + $0x3b8] sm:$0xff] %vm140, %v2693
  %2822 = vst [vmem:[%s2 + $0x3c0] sm:$0xff] %v2694
  %2823 = vst.msk [vmem:[%s2 + $0x3c8] sm:$0xff] %vm140, %v2695
  %2824 = vst [vmem:[%s2 + $0x3d0] sm:$0xff] %v2696
  %2825 = vst.msk [vmem:[%s2 + $0x3d8] sm:$0xff] %vm140, %v2697
  %2826 = vst [vmem:[%s2 + $0x3e0] sm:$0xff] %v2698
  %2827 = vst.msk [vmem:[%s2 + $0x3e8] sm:$0xff] %vm140, %v2699
  %2828 = vst [vmem:[%s2 + $0x3f0] sm:$0xff] %v2700
  %2829 = vst.msk [vmem:[%s2 + $0x3f8] sm:$0xff] %vm140, %v2701
  // Predicated region
  $region10: #{tpu_custom_call.1} parent=0 // pred_check
    _
  $region11: #{tpu_custom_call.1} parent=0 // pred_check_branch
    %2831 = sbr.rel (0) target = $region13
  $region12: #{tpu_custom_call.1} parent=0 // pred_region
    _
  $region13: #{tpu_custom_call.1} parent=0 // pred_fallthru
    _
  // Predicated region
  $region14: #{tpu_custom_call.1} parent=0 // pred_check
    _
  $region15: #{tpu_custom_call.1} parent=0 // pred_check_branch
    %2833 = sbr.rel (0) target = $region17
  $region16: #{tpu_custom_call.1} parent=0 // pred_region
    _
  $region17: #{tpu_custom_call.1} parent=0 // pred_fallthru
    _

</llo_original>
